<compile_context>
chip_gen: v7x
topology: tpu7x:2x2x1
jax: 0.10.0
libtpu: 0.0.40
codegen_flags: <defaults>
</compile_context>

<pallas_src>
import functools

import numpy as np
import jax
import jax.numpy as jnp
from jax.experimental import pallas as pl
from jax.experimental.pallas import tpu as pltpu


# ----------------------------------------------------------------------------
# Fused Up kernel (one grid step == one batch element).
# All arrays use the (channels, padded-flat-spatial) layout:
#   channels -> sublanes, Hp*Wp (padded to multiple of 128) -> lanes.
# ----------------------------------------------------------------------------
def _up_kernel(x1_ref, x2_ref, up_ref, wsq_ref, ssq_ref, bsq_ref,
               w1_ref, s1_ref, b1_ref, w2_ref, s2_ref, b2_ref, mask_ref,
               o_ref, *, wp, lpad, kh, kw, pad):
    # ---- squeeze: 1x1 ConvNormAct at the LOW resolution (before upsample) ----
    sq = jnp.dot(wsq_ref[...], x1_ref[0], preferred_element_type=jnp.float32)
    sq = jnp.maximum(sq * ssq_ref[...] + bsq_ref[...], 0.0)        # (C2, H1*W1)

    # ---- nearest-2x upsample + diff-pad + conv-pad as a 0/1 gather matmul ----
    x1u = jnp.dot(sq, up_ref[...], preferred_element_type=jnp.float32)  # (C2, Lpad)

    # ---- torch.cat([x2, x1], channel)  (sublane concat) ----------------------
    xcat = jnp.concatenate([x2_ref[0], x1u], axis=0)                # (Ccat, Lpad)

    def conv_cna(xpadflat, wflat, scale, bias):
        # On the zero-padded flat image, tap (dy,dx) of interior output lane q
        # reads input lane q + off, off = (dy-pad)*Wp + (dx-pad).  The cyclic
        # roll never wraps for interior lanes; border/tail lanes carry garbage
        # that is masked (conv1) or sliced away in the wrapper (conv2).
        taps = []
        for dy in range(kh):
            for dx in range(kw):
                off = (dy - pad) * wp + (dx - pad)
                taps.append(xpadflat if off == 0
                            else pltpu.roll(xpadflat, shift=(-off) % lpad, axis=1))
        stacked = jnp.concatenate(taps, axis=0)                     # (kh*kw*C, Lpad)
        acc = jnp.dot(wflat, stacked, preferred_element_type=jnp.float32)
        return jnp.maximum(acc * scale + bias, 0.0)                 # (Cout, Lpad)

    # ---- DoubleConv, intermediate kept in VMEM/vregs -------------------------
    h = conv_cna(xcat, w1_ref[...], s1_ref[...], b1_ref[...]) * mask_ref[...]
    y = conv_cna(h, w2_ref[...], s2_ref[...], b2_ref[...])
    out = jnp.maximum(y + xcat, 0.0)       # residual is the PRE-conv concat input
    o_ref[0] = out.astype(o_ref.dtype)


# ----------------------------------------------------------------------------
# Up.forward  (dim=2, bilinear=True), NCHW in / NCHW out
# ----------------------------------------------------------------------------
def up_forward(x1_nchw, x2_nchw, params):
    n, cin, h1, w1s = x1_nchw.shape
    _, cskip, h2, w2s = x2_nchw.shape
    c2 = params["w_sq"].shape[-1]                 # Cin // 2
    cout = params["w2"].shape[-1]
    ccat = cskip + c2
    kh, kw, w1_cin, _ = params["w1"].shape
    pad = kh // 2

    # Residual add requires cat-channels == out-channels (feedback concern).
    assert ccat == cout, (
        f"DoubleConv residual needs skip+squeeze channels ({ccat}) == out "
        f"channels ({cout})")
    assert w1_cin == ccat, (w1_cin, ccat)

    hp, wp = h2 + 2 * pad, w2s + 2 * pad
    l = hp * wp
    lpad = ((l + 127) // 128) * 128               # lane-dense, unmasked stores

    hu, wu = 2 * h1, 2 * w1s
    top = (h2 - hu) // 2
    left = (w2s - wu) // 2

    # Constant 0/1 matrix: (squeeze-resolution pixel) -> (upsampled, diff-padded,
    # conv-padded flat position).  Also the interior-lane mask.
    up_m = np.zeros((h1 * w1s, lpad), np.float32)
    for r in range(hp):
        for c in range(wp):
            y, x = r - pad, c - pad
            if 0 <= y < h2 and 0 <= x < w2s:
                yu, xu = y - top, x - left
                if 0 <= yu < hu and 0 <= xu < wu:
                    up_m[(yu // 2) * w1s + (xu // 2), r * wp + c] = 1.0
    mask = np.zeros((1, lpad), np.float32)
    for r in range(pad, pad + h2):
        mask[0, r * wp + pad: r * wp + pad + w2s] = 1.0

    # Inputs in channels-on-sublanes / flat-spatial-on-lanes layout.
    x1_flat = x1_nchw.reshape(n, cin, h1 * w1s).astype(jnp.float32)
    x2_flat = jnp.pad(x2_nchw, ((0, 0), (0, 0), (pad, pad), (pad, pad)))
    x2_flat = x2_flat.reshape(n, cskip, l).astype(jnp.float32)
    x2_flat = jnp.pad(x2_flat, ((0, 0), (0, 0), (0, lpad - l)))

    # Weights pre-transposed so the kernel's GEMMs are (Cout, K) @ (K, L).
    wsq_t = jnp.transpose(params["w_sq"][0, 0], (1, 0)).astype(jnp.float32)   # (C2, Cin)
    w1_f = jnp.transpose(params["w1"], (3, 0, 1, 2)).reshape(cout, kh * kw * ccat)
    w2_f = jnp.transpose(params["w2"], (3, 0, 1, 2)).reshape(cout, kh * kw * cout)
    ssq = params["s_sq"].reshape(c2, 1).astype(jnp.float32)
    bsq = params["b_sq"].reshape(c2, 1).astype(jnp.float32)
    s1r = params["s1"].reshape(cout, 1).astype(jnp.float32)
    b1r = params["b1"].reshape(cout, 1).astype(jnp.float32)
    s2r = params["s2"].reshape(cout, 1).astype(jnp.float32)
    b2r = params["b2"].reshape(cout, 1).astype(jnp.float32)

    kernel = functools.partial(_up_kernel, wp=wp, lpad=lpad, kh=kh, kw=kw, pad=pad)

    out_flat = pl.pallas_call(
        kernel,
        out_shape=jax.ShapeDtypeStruct((n, cout, lpad), jnp.float32),
        grid_spec=pltpu.PrefetchScalarGridSpec(
            num_scalar_prefetch=0,
            grid=(n,),
            in_specs=[
                pl.BlockSpec((1, cin, h1 * w1s), lambda i: (i, 0, 0)),
                pl.BlockSpec((1, cskip, lpad), lambda i: (i, 0, 0)),
                pl.BlockSpec((h1 * w1s, lpad), lambda i: (0, 0)),
                pl.BlockSpec((c2, cin), lambda i: (0, 0)),
                pl.BlockSpec((c2, 1), lambda i: (0, 0)),
                pl.BlockSpec((c2, 1), lambda i: (0, 0)),
                pl.BlockSpec((cout, kh * kw * ccat), lambda i: (0, 0)),
                pl.BlockSpec((cout, 1), lambda i: (0, 0)),
                pl.BlockSpec((cout, 1), lambda i: (0, 0)),
                pl.BlockSpec((cout, kh * kw * cout), lambda i: (0, 0)),
                pl.BlockSpec((cout, 1), lambda i: (0, 0)),
                pl.BlockSpec((cout, 1), lambda i: (0, 0)),
                pl.BlockSpec((1, lpad), lambda i: (0, 0)),
            ],
            out_specs=pl.BlockSpec((1, cout, lpad), lambda i: (i, 0, 0)),
        ),
        compiler_params=pltpu.CompilerParams(
            dimension_semantics=("parallel",)),     # v7x: one batch per TC
    )(x1_flat, x2_flat, jnp.asarray(up_m), wsq_t, ssq, bsq,
      w1_f, s1r, b1r, w2_f, s2r, b2r, jnp.asarray(mask))

    # Drop lane padding + conv padding -> NCHW output.
    out = out_flat[:, :, :l].reshape(n, cout, hp, wp)
    return out[:, :, pad:pad + h2, pad:pad + w2s]


# ----------------------------------------------------------------------------
# Pure-JAX reference (correctness check only) — follows the PyTorch order.
# ----------------------------------------------------------------------------
def _cna_ref(x, w, s, b, pad, residual=None):
    y = jax.lax.conv_general_dilated(
        x, w, window_strides=(1, 1), padding=[(pad, pad), (pad, pad)],
        dimension_numbers=("NHWC", "HWIO", "NHWC"))
    y = jnp.maximum(y * s + b, 0.0)
    if residual is not None:
        y = jnp.maximum(y + residual, 0.0)
    return y


def up_forward_ref(x1_nchw, x2_nchw, params):
    x1 = jnp.transpose(x1_nchw, (0, 2, 3, 1))
    x2 = jnp.transpose(x2_nchw, (0, 2, 3, 1))
    x1 = jnp.repeat(jnp.repeat(x1, 2, axis=1), 2, axis=2)        # nearest 2x
    x1 = _cna_ref(x1, params["w_sq"], params["s_sq"], params["b_sq"], 0)
    dY = x2.shape[1] - x1.shape[1]
    dX = x2.shape[2] - x1.shape[2]
    x1 = jnp.pad(x1, ((0, 0), (dY // 2, dY - dY // 2),
                      (dX // 2, dX - dX // 2), (0, 0)))
    x = jnp.concatenate([x2, x1], axis=-1)
    h = _cna_ref(x, params["w1"], params["s1"], params["b1"], 1)
    out = _cna_ref(h, params["w2"], params["s2"], params["b2"], 1, residual=x)
    return jnp.transpose(out, (0, 3, 1, 2))


# ----------------------------------------------------------------------------
# Deterministic parameters (Conv weight HWIO, eval-mode BatchNorm folded)
# ----------------------------------------------------------------------------
def _make_cna_params(key, kh, kw, cin, cout):
    kw_, kg, kb, km, kv = jax.random.split(key, 5)
    w = 0.1 * jax.random.normal(kw_, (kh, kw, cin, cout), jnp.float32)
    gamma = 1.0 + 0.1 * jax.random.normal(kg, (cout,), jnp.float32)
    beta = 0.05 * jax.random.normal(kb, (cout,), jnp.float32)
    mean = 0.05 * jax.random.normal(km, (cout,), jnp.float32)
    var = 0.5 + jnp.abs(jax.random.normal(kv, (cout,), jnp.float32))
    eps = 1e-5
    scale = gamma / jnp.sqrt(var + eps)
    bias = beta - mean * scale
    return w, scale, bias


if __name__ == "__main__":
    # Up(dim=2, in_channels=8, out_channels=8, bilinear=True)
    N, C_in, C_out = 2, 8, 8
    H1 = W1 = 8            # x1 spatial (pre-upsample)
    H2 = W2 = 16           # x2 spatial (skip connection)
    C_skip = C_in // 2     # x2 channels

    key = jax.random.PRNGKey(0)
    k_x1, k_x2, k_sq, k_c1, k_c2 = jax.random.split(key, 5)

    x1 = jax.random.normal(k_x1, (N, C_in, H1, W1), jnp.float32)       # NCHW
    x2 = jax.random.normal(k_x2, (N, C_skip, H2, W2), jnp.float32)     # NCHW

    w_sq, s_sq, b_sq = _make_cna_params(k_sq, 1, 1, C_in, C_in // 2)
    cat_c = C_skip + C_in // 2                                          # == C_in
    w1, s1, b1 = _make_cna_params(k_c1, 3, 3, cat_c, C_out)
    w2, s2, b2 = _make_cna_params(k_c2, 3, 3, C_out, C_out)

    params = dict(w_sq=w_sq, s_sq=s_sq, b_sq=b_sq,
                  w1=w1, s1=s1, b1=b1, w2=w2, s2=s2, b2=b2)

    out = jax.block_until_ready(up_forward(x1, x2, params))
    ref = jax.block_until_ready(up_forward_ref(x1, x2, params))

    assert out.shape == (N, C_out, H2, W2), out.shape
    assert jnp.allclose(out, ref, atol=1e-4, rtol=1e-4), (
        float(jnp.max(jnp.abs(out - ref))))

    print("KERNEL_OK")
</pallas_src>

<mosaic_0001>
module attributes {stable_mosaic.version = 11 : i64} {
  func.func @_up_kernel(%arg0: i32, %arg1: memref<1x8x64xf32, #tpu.memory_space<vmem>>, %arg2: memref<1x4x384xf32, #tpu.memory_space<vmem>>, %arg3: memref<64x384xf32, #tpu.memory_space<vmem>>, %arg4: memref<4x8xf32, #tpu.memory_space<vmem>>, %arg5: memref<4x1xf32, #tpu.memory_space<vmem>>, %arg6: memref<4x1xf32, #tpu.memory_space<vmem>>, %arg7: memref<8x72xf32, #tpu.memory_space<vmem>>, %arg8: memref<8x1xf32, #tpu.memory_space<vmem>>, %arg9: memref<8x1xf32, #tpu.memory_space<vmem>>, %arg10: memref<8x72xf32, #tpu.memory_space<vmem>>, %arg11: memref<8x1xf32, #tpu.memory_space<vmem>>, %arg12: memref<8x1xf32, #tpu.memory_space<vmem>>, %arg13: memref<1x384xf32, #tpu.memory_space<vmem>>, %arg14: memref<1x8x384xf32, #tpu.memory_space<vmem>>) attributes {dimension_semantics = [#tpu.dimension_semantics<parallel>], iteration_bounds = array<i64: 2>, scalar_prefetch = 0 : i64, scratch_operands = 0 : i64, tpu.core_type = #tpu.core_type<tc>, window_params = [{transform_indices = @transform_0, window_bounds = array<i64: 1, 8, 64>}, {transform_indices = @transform_1, window_bounds = array<i64: 1, 4, 384>}, {pipeline_mode = #tpu.pipeline_mode<synchronous>, transform_indices = @transform_2, window_bounds = array<i64: 64, 384>}, {pipeline_mode = #tpu.pipeline_mode<synchronous>, transform_indices = @transform_3, window_bounds = array<i64: 4, 8>}, {pipeline_mode = #tpu.pipeline_mode<synchronous>, transform_indices = @transform_4, window_bounds = array<i64: 4, 1>}, {pipeline_mode = #tpu.pipeline_mode<synchronous>, transform_indices = @transform_5, window_bounds = array<i64: 4, 1>}, {pipeline_mode = #tpu.pipeline_mode<synchronous>, transform_indices = @transform_6, window_bounds = array<i64: 8, 72>}, {pipeline_mode = #tpu.pipeline_mode<synchronous>, transform_indices = @transform_7, window_bounds = array<i64: 8, 1>}, {pipeline_mode = #tpu.pipeline_mode<synchronous>, transform_indices = @transform_8, window_bounds = array<i64: 8, 1>}, {pipeline_mode = #tpu.pipeline_mode<synchronous>, transform_indices = @transform_9, window_bounds = array<i64: 8, 72>}, {pipeline_mode = #tpu.pipeline_mode<synchronous>, transform_indices = @transform_10, window_bounds = array<i64: 8, 1>}, {pipeline_mode = #tpu.pipeline_mode<synchronous>, transform_indices = @transform_11, window_bounds = array<i64: 8, 1>}, {pipeline_mode = #tpu.pipeline_mode<synchronous>, transform_indices = @transform_12, window_bounds = array<i64: 1, 384>}, {transform_indices = @transform_13, window_bounds = array<i64: 1, 8, 384>}]} {
    %c0 = arith.constant 0 : index
    %c0_0 = arith.constant 0 : index
    %0 = vector.load %arg4[%c0, %c0_0] : memref<4x8xf32, #tpu.memory_space<vmem>>, vector<4x8xf32>
    %c0_1 = arith.constant 0 : index
    %c0_2 = arith.constant 0 : index
    %c0_3 = arith.constant 0 : index
    %1 = vector.load %arg1[%c0_1, %c0_2, %c0_3] : memref<1x8x64xf32, #tpu.memory_space<vmem>>, vector<1x8x64xf32>
    %2 = vector.shape_cast %1 : vector<1x8x64xf32> to vector<8x64xf32>
    %cst = arith.constant dense<0.000000e+00> : vector<4x64xf32>
    %3 = tpu.matmul %0, %2, %cst {dimension_numbers = #tpu.dot_dimension_numbers<[1], [0], [0], [1], [0, 0, 1, 1], [], []>} : vector<4x8xf32>, vector<8x64xf32>, vector<4x64xf32> -> vector<4x64xf32>
    %c0_4 = arith.constant 0 : index
    %c0_5 = arith.constant 0 : index
    %4 = vector.load %arg5[%c0_4, %c0_5] : memref<4x1xf32, #tpu.memory_space<vmem>>, vector<4x1xf32>
    %5 = vector.broadcast %4 : vector<4x1xf32> to vector<4x64xf32>
    %6 = arith.mulf %3, %5 : vector<4x64xf32>
    %c0_6 = arith.constant 0 : index
    %c0_7 = arith.constant 0 : index
    %7 = vector.load %arg6[%c0_6, %c0_7] : memref<4x1xf32, #tpu.memory_space<vmem>>, vector<4x1xf32>
    %8 = vector.broadcast %7 : vector<4x1xf32> to vector<4x64xf32>
    %9 = arith.addf %6, %8 : vector<4x64xf32>
    %cst_8 = arith.constant 0.000000e+00 : f32
    %10 = vector.broadcast %cst_8 : f32 to vector<4x64xf32>
    %11 = arith.maximumf %9, %10 : vector<4x64xf32>
    %c0_9 = arith.constant 0 : index
    %c0_10 = arith.constant 0 : index
    %12 = vector.load %arg3[%c0_9, %c0_10] : memref<64x384xf32, #tpu.memory_space<vmem>>, vector<64x384xf32>
    %cst_11 = arith.constant dense<0.000000e+00> : vector<4x384xf32>
    %13 = tpu.matmul %11, %12, %cst_11 {dimension_numbers = #tpu.dot_dimension_numbers<[1], [0], [0], [1], [0, 0, 1, 1], [], []>} : vector<4x64xf32>, vector<64x384xf32>, vector<4x384xf32> -> vector<4x384xf32>
    %c0_12 = arith.constant 0 : index
    %c0_13 = arith.constant 0 : index
    %c0_14 = arith.constant 0 : index
    %14 = vector.load %arg2[%c0_12, %c0_13, %c0_14] : memref<1x4x384xf32, #tpu.memory_space<vmem>>, vector<1x4x384xf32>
    %15 = vector.shape_cast %14 : vector<1x4x384xf32> to vector<4x384xf32>
    %16 = tpu.concatenate %15, %13 in 0 : vector<4x384xf32>, vector<4x384xf32> -> vector<8x384xf32>
    %c0_15 = arith.constant 0 : index
    %c0_16 = arith.constant 0 : index
    %17 = vector.load %arg7[%c0_15, %c0_16] : memref<8x72xf32, #tpu.memory_space<vmem>>, vector<8x72xf32>
    %c0_17 = arith.constant 0 : index
    %c0_18 = arith.constant 0 : index
    %18 = vector.load %arg8[%c0_17, %c0_18] : memref<8x1xf32, #tpu.memory_space<vmem>>, vector<8x1xf32>
    %c0_19 = arith.constant 0 : index
    %c0_20 = arith.constant 0 : index
    %19 = vector.load %arg9[%c0_19, %c0_20] : memref<8x1xf32, #tpu.memory_space<vmem>>, vector<8x1xf32>
    %c19_i32 = arith.constant 19 : i32
    %20 = tpu.dynamic_rotate %16 by %c19_i32 dim 1 : vector<8x384xf32>, i32 -> vector<8x384xf32>
    %c18_i32 = arith.constant 18 : i32
    %21 = tpu.dynamic_rotate %16 by %c18_i32 dim 1 : vector<8x384xf32>, i32 -> vector<8x384xf32>
    %c17_i32 = arith.constant 17 : i32
    %22 = tpu.dynamic_rotate %16 by %c17_i32 dim 1 : vector<8x384xf32>, i32 -> vector<8x384xf32>
    %c1_i32 = arith.constant 1 : i32
    %23 = tpu.dynamic_rotate %16 by %c1_i32 dim 1 : vector<8x384xf32>, i32 -> vector<8x384xf32>
    %c383_i32 = arith.constant 383 : i32
    %24 = tpu.dynamic_rotate %16 by %c383_i32 dim 1 : vector<8x384xf32>, i32 -> vector<8x384xf32>
    %c367_i32 = arith.constant 367 : i32
    %25 = tpu.dynamic_rotate %16 by %c367_i32 dim 1 : vector<8x384xf32>, i32 -> vector<8x384xf32>
    %c366_i32 = arith.constant 366 : i32
    %26 = tpu.dynamic_rotate %16 by %c366_i32 dim 1 : vector<8x384xf32>, i32 -> vector<8x384xf32>
    %c365_i32 = arith.constant 365 : i32
    %27 = tpu.dynamic_rotate %16 by %c365_i32 dim 1 : vector<8x384xf32>, i32 -> vector<8x384xf32>
    %28 = tpu.concatenate %20, %21, %22, %23, %16, %24, %25, %26, %27 in 0 : vector<8x384xf32>, vector<8x384xf32>, vector<8x384xf32>, vector<8x384xf32>, vector<8x384xf32>, vector<8x384xf32>, vector<8x384xf32>, vector<8x384xf32>, vector<8x384xf32> -> vector<72x384xf32>
    %cst_21 = arith.constant dense<0.000000e+00> : vector<8x384xf32>
    %29 = tpu.matmul %17, %28, %cst_21 {dimension_numbers = #tpu.dot_dimension_numbers<[1], [0], [0], [1], [0, 0, 1, 1], [], []>} : vector<8x72xf32>, vector<72x384xf32>, vector<8x384xf32> -> vector<8x384xf32>
    %30 = vector.broadcast %18 : vector<8x1xf32> to vector<8x384xf32>
    %31 = arith.mulf %29, %30 : vector<8x384xf32>
    %32 = vector.broadcast %19 : vector<8x1xf32> to vector<8x384xf32>
    %33 = arith.addf %31, %32 : vector<8x384xf32>
    %cst_22 = arith.constant 0.000000e+00 : f32
    %34 = vector.broadcast %cst_22 : f32 to vector<8x384xf32>
    %35 = arith.maximumf %33, %34 : vector<8x384xf32>
    %c0_23 = arith.constant 0 : index
    %c0_24 = arith.constant 0 : index
    %36 = vector.load %arg13[%c0_23, %c0_24] : memref<1x384xf32, #tpu.memory_space<vmem>>, vector<1x384xf32>
    %37 = vector.broadcast %36 : vector<1x384xf32> to vector<8x384xf32>
    %38 = arith.mulf %35, %37 : vector<8x384xf32>
    %c0_25 = arith.constant 0 : index
    %c0_26 = arith.constant 0 : index
    %39 = vector.load %arg10[%c0_25, %c0_26] : memref<8x72xf32, #tpu.memory_space<vmem>>, vector<8x72xf32>
    %c0_27 = arith.constant 0 : index
    %c0_28 = arith.constant 0 : index
    %40 = vector.load %arg11[%c0_27, %c0_28] : memref<8x1xf32, #tpu.memory_space<vmem>>, vector<8x1xf32>
    %c0_29 = arith.constant 0 : index
    %c0_30 = arith.constant 0 : index
    %41 = vector.load %arg12[%c0_29, %c0_30] : memref<8x1xf32, #tpu.memory_space<vmem>>, vector<8x1xf32>
    %c19_i32_31 = arith.constant 19 : i32
    %42 = tpu.dynamic_rotate %38 by %c19_i32_31 dim 1 : vector<8x384xf32>, i32 -> vector<8x384xf32>
    %c18_i32_32 = arith.constant 18 : i32
    %43 = tpu.dynamic_rotate %38 by %c18_i32_32 dim 1 : vector<8x384xf32>, i32 -> vector<8x384xf32>
    %c17_i32_33 = arith.constant 17 : i32
    %44 = tpu.dynamic_rotate %38 by %c17_i32_33 dim 1 : vector<8x384xf32>, i32 -> vector<8x384xf32>
    %c1_i32_34 = arith.constant 1 : i32
    %45 = tpu.dynamic_rotate %38 by %c1_i32_34 dim 1 : vector<8x384xf32>, i32 -> vector<8x384xf32>
    %c383_i32_35 = arith.constant 383 : i32
    %46 = tpu.dynamic_rotate %38 by %c383_i32_35 dim 1 : vector<8x384xf32>, i32 -> vector<8x384xf32>
    %c367_i32_36 = arith.constant 367 : i32
    %47 = tpu.dynamic_rotate %38 by %c367_i32_36 dim 1 : vector<8x384xf32>, i32 -> vector<8x384xf32>
    %c366_i32_37 = arith.constant 366 : i32
    %48 = tpu.dynamic_rotate %38 by %c366_i32_37 dim 1 : vector<8x384xf32>, i32 -> vector<8x384xf32>
    %c365_i32_38 = arith.constant 365 : i32
    %49 = tpu.dynamic_rotate %38 by %c365_i32_38 dim 1 : vector<8x384xf32>, i32 -> vector<8x384xf32>
    %50 = tpu.concatenate %42, %43, %44, %45, %38, %46, %47, %48, %49 in 0 : vector<8x384xf32>, vector<8x384xf32>, vector<8x384xf32>, vector<8x384xf32>, vector<8x384xf32>, vector<8x384xf32>, vector<8x384xf32>, vector<8x384xf32>, vector<8x384xf32> -> vector<72x384xf32>
    %cst_39 = arith.constant dense<0.000000e+00> : vector<8x384xf32>
    %51 = tpu.matmul %39, %50, %cst_39 {dimension_numbers = #tpu.dot_dimension_numbers<[1], [0], [0], [1], [0, 0, 1, 1], [], []>} : vector<8x72xf32>, vector<72x384xf32>, vector<8x384xf32> -> vector<8x384xf32>
    %52 = vector.broadcast %40 : vector<8x1xf32> to vector<8x384xf32>
    %53 = arith.mulf %51, %52 : vector<8x384xf32>
    %54 = vector.broadcast %41 : vector<8x1xf32> to vector<8x384xf32>
    %55 = arith.addf %53, %54 : vector<8x384xf32>
    %cst_40 = arith.constant 0.000000e+00 : f32
    %56 = vector.broadcast %cst_40 : f32 to vector<8x384xf32>
    %57 = arith.maximumf %55, %56 : vector<8x384xf32>
    %58 = arith.addf %57, %16 : vector<8x384xf32>
    %cst_41 = arith.constant 0.000000e+00 : f32
    %59 = vector.broadcast %cst_41 : f32 to vector<8x384xf32>
    %60 = arith.maximumf %58, %59 : vector<8x384xf32>
    %c0_42 = arith.constant 0 : index
    %c0_43 = arith.constant 0 : index
    %c0_44 = arith.constant 0 : index
    %61 = vector.load %arg14[%c0_42, %c0_43, %c0_44] : memref<1x8x384xf32, #tpu.memory_space<vmem>>, vector<1x8x384xf32>
    %62 = vector.shape_cast %61 : vector<1x8x384xf32> to vector<8x384xf32>
    %63 = vector.shape_cast %60 : vector<8x384xf32> to vector<1x8x384xf32>
    tpu.vector_store %arg14[%c0_42, %c0_43, %c0_44], %63 {strides = array<i32>} : memref<1x8x384xf32, #tpu.memory_space<vmem>>, vector<1x8x384xf32>,
    return
  }
  func.func @transform_0(%arg0: i32) -> (i32, i32, i32) {
    %c0_i32 = arith.constant 0 : i32
    %c0_i32_0 = arith.constant 0 : i32
    %c0_i32_1 = arith.constant 0 : i32
    return %arg0, %c0_i32, %c0_i32_0 : i32, i32, i32
  }
  func.func @transform_1(%arg0: i32) -> (i32, i32, i32) {
    %c0_i32 = arith.constant 0 : i32
    %c0_i32_0 = arith.constant 0 : i32
    %c0_i32_1 = arith.constant 0 : i32
    return %arg0, %c0_i32, %c0_i32_0 : i32, i32, i32
  }
  func.func @transform_2(%arg0: i32) -> (i32, i32) {
    %c0_i32 = arith.constant 0 : i32
    %c0_i32_0 = arith.constant 0 : i32
    %c0_i32_1 = arith.constant 0 : i32
    return %c0_i32, %c0_i32_0 : i32, i32
  }
  func.func @transform_3(%arg0: i32) -> (i32, i32) {
    %c0_i32 = arith.constant 0 : i32
    %c0_i32_0 = arith.constant 0 : i32
    %c0_i32_1 = arith.constant 0 : i32
    return %c0_i32, %c0_i32_0 : i32, i32
  }
  func.func @transform_4(%arg0: i32) -> (i32, i32) {
    %c0_i32 = arith.constant 0 : i32
    %c0_i32_0 = arith.constant 0 : i32
    %c0_i32_1 = arith.constant 0 : i32
    return %c0_i32, %c0_i32_0 : i32, i32
  }
  func.func @transform_5(%arg0: i32) -> (i32, i32) {
    %c0_i32 = arith.constant 0 : i32
    %c0_i32_0 = arith.constant 0 : i32
    %c0_i32_1 = arith.constant 0 : i32
    return %c0_i32, %c0_i32_0 : i32, i32
  }
  func.func @transform_6(%arg0: i32) -> (i32, i32) {
    %c0_i32 = arith.constant 0 : i32
    %c0_i32_0 = arith.constant 0 : i32
    %c0_i32_1 = arith.constant 0 : i32
    return %c0_i32, %c0_i32_0 : i32, i32
  }
  func.func @transform_7(%arg0: i32) -> (i32, i32) {
    %c0_i32 = arith.constant 0 : i32
    %c0_i32_0 = arith.constant 0 : i32
    %c0_i32_1 = arith.constant 0 : i32
    return %c0_i32, %c0_i32_0 : i32, i32
  }
  func.func @transform_8(%arg0: i32) -> (i32, i32) {
    %c0_i32 = arith.constant 0 : i32
    %c0_i32_0 = arith.constant 0 : i32
    %c0_i32_1 = arith.constant 0 : i32
    return %c0_i32, %c0_i32_0 : i32, i32
  }
  func.func @transform_9(%arg0: i32) -> (i32, i32) {
    %c0_i32 = arith.constant 0 : i32
    %c0_i32_0 = arith.constant 0 : i32
    %c0_i32_1 = arith.constant 0 : i32
    return %c0_i32, %c0_i32_0 : i32, i32
  }
  func.func @transform_10(%arg0: i32) -> (i32, i32) {
    %c0_i32 = arith.constant 0 : i32
    %c0_i32_0 = arith.constant 0 : i32
    %c0_i32_1 = arith.constant 0 : i32
    return %c0_i32, %c0_i32_0 : i32, i32
  }
  func.func @transform_11(%arg0: i32) -> (i32, i32) {
    %c0_i32 = arith.constant 0 : i32
    %c0_i32_0 = arith.constant 0 : i32
    %c0_i32_1 = arith.constant 0 : i32
    return %c0_i32, %c0_i32_0 : i32, i32
  }
  func.func @transform_12(%arg0: i32) -> (i32, i32) {
    %c0_i32 = arith.constant 0 : i32
    %c0_i32_0 = arith.constant 0 : i32
    %c0_i32_1 = arith.constant 0 : i32
    return %c0_i32, %c0_i32_0 : i32, i32
  }
  func.func @transform_13(%arg0: i32) -> (i32, i32, i32) {
    %c0_i32 = arith.constant 0 : i32
    %c0_i32_0 = arith.constant 0 : i32
    %c0_i32_1 = arith.constant 0 : i32
    return %arg0, %c0_i32, %c0_i32_0 : i32, i32, i32
  }
}

</mosaic_0001>

<llo_original>
// kernel: tpu_custom_call.1
$region0: #{tpu_custom_call.1}
  #allocation0 [shape = 'u32[]', space=smem, size = 0x4, offset = 0x4, fixed_abs, tag = 'smem constant byte address 0x4 - core index']
  #allocation1 [shape = 'u32[144,128]{1,0:T(1,128)}', space=vmem, size = 0x12000, scoped, tag = 'internal scratch']
  %s0 = inlined_call_operand.vmem [shape: f32[2,8,64], index: 0, kind: input, shape index: {}]
  %s1 = inlined_call_operand.vmem [shape: f32[2,4,384], index: 1, kind: input, shape index: {}]
  %s2 = inlined_call_operand.hbm [shape: f32[64,384], index: 2, kind: input, shape index: {}]
  %s3 = inlined_call_operand.hbm [shape: f32[4,8], index: 3, kind: input, shape index: {}]
  %s4 = inlined_call_operand.vmem [shape: f32[4,1], index: 4, kind: input, shape index: {}]
  %s5 = inlined_call_operand.vmem [shape: f32[4,1], index: 5, kind: input, shape index: {}]
  %s6 = inlined_call_operand.vmem [shape: f32[8,72], index: 6, kind: input, shape index: {}]
  %s7 = inlined_call_operand.vmem [shape: f32[8,1], index: 7, kind: input, shape index: {}]
  %s8 = inlined_call_operand.vmem [shape: f32[8,1], index: 8, kind: input, shape index: {}]
  %s9 = inlined_call_operand.vmem [shape: f32[8,72], index: 9, kind: input, shape index: {}]
  %s10 = inlined_call_operand.vmem [shape: f32[8,1], index: 10, kind: input, shape index: {}]
  %s11 = inlined_call_operand.vmem [shape: f32[8,1], index: 11, kind: input, shape index: {}]
  %s12 = inlined_call_operand.vmem [shape: f32[1,384], index: 12, kind: input, shape index: {}]
  %s13 = inlined_call_operand.hbm [shape: f32[2,8,384], index: 13, kind: output, shape index: {}]
  %s14 = sld [smem:[#allocation0]]
  $region93: #{tpu_custom_call.1} parent=0
    _
  %s16 = ssub.s32 1, %s14
  %s17 = scalar_select 0, %s16, %s14
  $region1: #{tpu_custom_call.1} parent=0
    #allocation2 [shape = 'u8[98304]{0}', space=vmem, size = 0x18000, scoped, tag = 'input window, operand 2, single buffered']
    #allocation3 [shape = 's32[2]{0}', space=sflag, size = 0x8, scoped, tag = 'scoped memory for tpu_custom_call.1']
    #allocation4 [shape = 's32[2]{0}', space=sflag, size = 0x8, scoped, tag = 'scoped memory for tpu_custom_call.1']
    #allocation5 [shape = 'u8[2048]{0}', space=vmem, size = 0x800, scoped, tag = 'input window, operand 3, single buffered']
    #allocation6 [shape = 's32[1]{0}', space=sflag, size = 0x4, scoped, tag = 'scoped memory for tpu_custom_call.1']
    #allocation7 [shape = 'u8[24576]{0}', space=vmem, size = 0x6000, scoped, tag = 'output window, operand 0']
    %18 = vsyncpa [#allocation3], 0
    %19 = vsyncpa [#allocation6], 0
    %20 = vsyncpa [#allocation4], 0
    %s21 = scalar_lea.sflag [#allocation4], 1
    %22 = vsyncpa %s21, 0
    loop: start=0, step=1, limit=4
    $region2: #{tpu_custom_call.1} parent=1 // loop_pre_header
      _
    $region3: #{tpu_custom_call.1} parent=1 // loop_header
      %s24 = sphi 0, %s28
      %p25 = scmp.ge.s32.totalorder %s24, 4
      %s34 = sphi 0, %s36
      %s37 = sphi 0, %s34
      %s38 = sphi 0, %s37
      %s54 = sphi 0, %s38
      %s60 = sphi 0, %s62
      %s63 = sphi 0, %s60
      %s64 = sphi 0, %s63
      %s80 = sphi 0, %s64
      %s84 = sphi 0, %s84
      %s86 = sphi 0, %s84
      %s87 = sphi 0, %s86
      %s101 = sphi 0, %s87
      %s105 = sphi 0, %s105
      %s107 = sphi 0, %s105
      %s108 = sphi 0, %s107
      %s122 = sphi 0, %s108
      %s126 = sphi 0, %s126
      %s128 = sphi 0, %s126
      %s129 = sphi 0, %s128
      %s143 = sphi 0, %s129
      %s147 = sphi 0, %s147
      %s149 = sphi 0, %s147
      %s150 = sphi 0, %s149
      %s164 = sphi 0, %s150
      %s168 = sphi 0, %s168
      %s170 = sphi 0, %s168
      %s171 = sphi 0, %s170
      %s185 = sphi 0, %s171
      %s189 = sphi 0, %s189
      %s191 = sphi 0, %s189
      %s192 = sphi 0, %s191
      %s206 = sphi 0, %s192
      %s210 = sphi 0, %s210
      %s212 = sphi 0, %s210
      %s213 = sphi 0, %s212
      %s227 = sphi 0, %s213
      %s231 = sphi 0, %s231
      %s233 = sphi 0, %s231
      %s234 = sphi 0, %s233
      %s248 = sphi 0, %s234
      %s252 = sphi 0, %s252
      %s254 = sphi 0, %s252
      %s255 = sphi 0, %s254
      %s269 = sphi 0, %s255
      %s273 = sphi 0, %s273
      %s275 = sphi 0, %s273
      %s276 = sphi 0, %s275
      %s290 = sphi 0, %s276
      %s294 = sphi 0, %s294
      %s296 = sphi 0, %s294
      %s297 = sphi 0, %s296
      %s311 = sphi 0, %s297
      %s317 = sphi 0, %s319
      %s320 = sphi 0, %s317
      %s321 = sphi 0, %s320
      %s337 = sphi 0, %s321
    $region4: #{tpu_custom_call.1} parent=1 // loop_header_branch
      %27 = sbr.rel (%p25) target = $region8
    $region5: #{tpu_custom_call.1} parent=1 // loop_body
      %s29 = ssub.s32 %s24, 1
      %s30 = ssub.s32 %s24, 2
      %s31 = sadd.s32 %s24, 1
      %s32 = ssub.s32 %s24, %s31
      %p33 = scmp.eq.s32.totalorder %s32, 0
      %s35 = sadd.s32 %s34, 1
      %s36 = scalar_select %p33, %s34, %s35
      %p39 = pneg %p33
      %p40 = scmp.eq.s32.totalorder %s24, 1
      %p41 = por %p39, %p40
      %p42 = scmp.ne.s32.totalorder %s34, %s37
      %p43 = scmp.eq.s32.totalorder %s24, 0
      %p44 = por %p42, %p43
      %p45 = scmp.ne.s32.totalorder %s34, %s37
      %p46 = scmp.eq.s32.totalorder %s29, 1
      %p47 = por %p45, %p46
      %p48 = scmp.ne.s32.totalorder %s37, %s38
      %p49 = scmp.eq.s32.totalorder %s29, 0
      %p50 = por %p48, %p49
      %p51 = scmp.ne.s32.totalorder %s37, %s38
      %p52 = scmp.eq.s32.totalorder %s30, 1
      %p53 = por %p51, %p52
      %p55 = scmp.ne.s32.totalorder %s38, %s54
      %p56 = scmp.eq.s32.totalorder %s30, 0
      %p57 = por %p55, %p56
      %s58 = ssub.s32 %s24, %s31
      %p59 = scmp.eq.s32.totalorder %s58, 0
      %s61 = sadd.s32 %s60, 1
      %s62 = scalar_select %p59, %s60, %s61
      %p65 = pneg %p59
      %p66 = scmp.eq.s32.totalorder %s24, 1
      %p67 = por %p65, %p66
      %p68 = scmp.ne.s32.totalorder %s60, %s63
      %p69 = scmp.eq.s32.totalorder %s24, 0
      %p70 = por %p68, %p69
      %p71 = scmp.ne.s32.totalorder %s60, %s63
      %p72 = scmp.eq.s32.totalorder %s29, 1
      %p73 = por %p71, %p72
      %p74 = scmp.ne.s32.totalorder %s63, %s64
      %p75 = scmp.eq.s32.totalorder %s29, 0
      %p76 = por %p74, %p75
      %p77 = scmp.ne.s32.totalorder %s63, %s64
      %p78 = scmp.eq.s32.totalorder %s30, 1
      %p79 = por %p77, %p78
      %p81 = scmp.ne.s32.totalorder %s64, %s80
      %p82 = scmp.eq.s32.totalorder %s30, 0
      %p83 = por %p81, %p82
      %s85 = sadd.s32 %s84, 1
      %p88 = scmp.eq.s32.totalorder %s24, 1
      %p89 = scmp.ne.s32.totalorder %s84, %s86
      %p90 = scmp.eq.s32.totalorder %s24, 0
      %p91 = por %p89, %p90
      %p92 = scmp.ne.s32.totalorder %s84, %s86
      %p93 = scmp.eq.s32.totalorder %s29, 1
      %p94 = por %p92, %p93
      %p95 = scmp.ne.s32.totalorder %s86, %s87
      %p96 = scmp.eq.s32.totalorder %s29, 0
      %p97 = por %p95, %p96
      %p98 = scmp.ne.s32.totalorder %s86, %s87
      %p99 = scmp.eq.s32.totalorder %s30, 1
      %p100 = por %p98, %p99
      %p102 = scmp.ne.s32.totalorder %s87, %s101
      %p103 = scmp.eq.s32.totalorder %s30, 0
      %p104 = por %p102, %p103
      %s106 = sadd.s32 %s105, 1
      %p109 = scmp.eq.s32.totalorder %s24, 1
      %p110 = scmp.ne.s32.totalorder %s105, %s107
      %p111 = scmp.eq.s32.totalorder %s24, 0
      %p112 = por %p110, %p111
      %p113 = scmp.ne.s32.totalorder %s105, %s107
      %p114 = scmp.eq.s32.totalorder %s29, 1
      %p115 = por %p113, %p114
      %p116 = scmp.ne.s32.totalorder %s107, %s108
      %p117 = scmp.eq.s32.totalorder %s29, 0
      %p118 = por %p116, %p117
      %p119 = scmp.ne.s32.totalorder %s107, %s108
      %p120 = scmp.eq.s32.totalorder %s30, 1
      %p121 = por %p119, %p120
      %p123 = scmp.ne.s32.totalorder %s108, %s122
      %p124 = scmp.eq.s32.totalorder %s30, 0
      %p125 = por %p123, %p124
      %s127 = sadd.s32 %s126, 1
      %p130 = scmp.eq.s32.totalorder %s24, 1
      %p131 = scmp.ne.s32.totalorder %s126, %s128
      %p132 = scmp.eq.s32.totalorder %s24, 0
      %p133 = por %p131, %p132
      %p134 = scmp.ne.s32.totalorder %s126, %s128
      %p135 = scmp.eq.s32.totalorder %s29, 1
      %p136 = por %p134, %p135
      %p137 = scmp.ne.s32.totalorder %s128, %s129
      %p138 = scmp.eq.s32.totalorder %s29, 0
      %p139 = por %p137, %p138
      %p140 = scmp.ne.s32.totalorder %s128, %s129
      %p141 = scmp.eq.s32.totalorder %s30, 1
      %p142 = por %p140, %p141
      %p144 = scmp.ne.s32.totalorder %s129, %s143
      %p145 = scmp.eq.s32.totalorder %s30, 0
      %p146 = por %p144, %p145
      %s148 = sadd.s32 %s147, 1
      %p151 = scmp.eq.s32.totalorder %s24, 1
      %p152 = scmp.ne.s32.totalorder %s147, %s149
      %p153 = scmp.eq.s32.totalorder %s24, 0
      %p154 = por %p152, %p153
      %p155 = scmp.ne.s32.totalorder %s147, %s149
      %p156 = scmp.eq.s32.totalorder %s29, 1
      %p157 = por %p155, %p156
      %p158 = scmp.ne.s32.totalorder %s149, %s150
      %p159 = scmp.eq.s32.totalorder %s29, 0
      %p160 = por %p158, %p159
      %p161 = scmp.ne.s32.totalorder %s149, %s150
      %p162 = scmp.eq.s32.totalorder %s30, 1
      %p163 = por %p161, %p162
      %p165 = scmp.ne.s32.totalorder %s150, %s164
      %p166 = scmp.eq.s32.totalorder %s30, 0
      %p167 = por %p165, %p166
      %s169 = sadd.s32 %s168, 1
      %p172 = scmp.eq.s32.totalorder %s24, 1
      %p173 = scmp.ne.s32.totalorder %s168, %s170
      %p174 = scmp.eq.s32.totalorder %s24, 0
      %p175 = por %p173, %p174
      %p176 = scmp.ne.s32.totalorder %s168, %s170
      %p177 = scmp.eq.s32.totalorder %s29, 1
      %p178 = por %p176, %p177
      %p179 = scmp.ne.s32.totalorder %s170, %s171
      %p180 = scmp.eq.s32.totalorder %s29, 0
      %p181 = por %p179, %p180
      %p182 = scmp.ne.s32.totalorder %s170, %s171
      %p183 = scmp.eq.s32.totalorder %s30, 1
      %p184 = por %p182, %p183
      %p186 = scmp.ne.s32.totalorder %s171, %s185
      %p187 = scmp.eq.s32.totalorder %s30, 0
      %p188 = por %p186, %p187
      %s190 = sadd.s32 %s189, 1
      %p193 = scmp.eq.s32.totalorder %s24, 1
      %p194 = scmp.ne.s32.totalorder %s189, %s191
      %p195 = scmp.eq.s32.totalorder %s24, 0
      %p196 = por %p194, %p195
      %p197 = scmp.ne.s32.totalorder %s189, %s191
      %p198 = scmp.eq.s32.totalorder %s29, 1
      %p199 = por %p197, %p198
      %p200 = scmp.ne.s32.totalorder %s191, %s192
      %p201 = scmp.eq.s32.totalorder %s29, 0
      %p202 = por %p200, %p201
      %p203 = scmp.ne.s32.totalorder %s191, %s192
      %p204 = scmp.eq.s32.totalorder %s30, 1
      %p205 = por %p203, %p204
      %p207 = scmp.ne.s32.totalorder %s192, %s206
      %p208 = scmp.eq.s32.totalorder %s30, 0
      %p209 = por %p207, %p208
      %s211 = sadd.s32 %s210, 1
      %p214 = scmp.eq.s32.totalorder %s24, 1
      %p215 = scmp.ne.s32.totalorder %s210, %s212
      %p216 = scmp.eq.s32.totalorder %s24, 0
      %p217 = por %p215, %p216
      %p218 = scmp.ne.s32.totalorder %s210, %s212
      %p219 = scmp.eq.s32.totalorder %s29, 1
      %p220 = por %p218, %p219
      %p221 = scmp.ne.s32.totalorder %s212, %s213
      %p222 = scmp.eq.s32.totalorder %s29, 0
      %p223 = por %p221, %p222
      %p224 = scmp.ne.s32.totalorder %s212, %s213
      %p225 = scmp.eq.s32.totalorder %s30, 1
      %p226 = por %p224, %p225
      %p228 = scmp.ne.s32.totalorder %s213, %s227
      %p229 = scmp.eq.s32.totalorder %s30, 0
      %p230 = por %p228, %p229
      %s232 = sadd.s32 %s231, 1
      %p235 = scmp.eq.s32.totalorder %s24, 1
      %p236 = scmp.ne.s32.totalorder %s231, %s233
      %p237 = scmp.eq.s32.totalorder %s24, 0
      %p238 = por %p236, %p237
      %p239 = scmp.ne.s32.totalorder %s231, %s233
      %p240 = scmp.eq.s32.totalorder %s29, 1
      %p241 = por %p239, %p240
      %p242 = scmp.ne.s32.totalorder %s233, %s234
      %p243 = scmp.eq.s32.totalorder %s29, 0
      %p244 = por %p242, %p243
      %p245 = scmp.ne.s32.totalorder %s233, %s234
      %p246 = scmp.eq.s32.totalorder %s30, 1
      %p247 = por %p245, %p246
      %p249 = scmp.ne.s32.totalorder %s234, %s248
      %p250 = scmp.eq.s32.totalorder %s30, 0
      %p251 = por %p249, %p250
      %s253 = sadd.s32 %s252, 1
      %p256 = scmp.eq.s32.totalorder %s24, 1
      %p257 = scmp.ne.s32.totalorder %s252, %s254
      %p258 = scmp.eq.s32.totalorder %s24, 0
      %p259 = por %p257, %p258
      %p260 = scmp.ne.s32.totalorder %s252, %s254
      %p261 = scmp.eq.s32.totalorder %s29, 1
      %p262 = por %p260, %p261
      %p263 = scmp.ne.s32.totalorder %s254, %s255
      %p264 = scmp.eq.s32.totalorder %s29, 0
      %p265 = por %p263, %p264
      %p266 = scmp.ne.s32.totalorder %s254, %s255
      %p267 = scmp.eq.s32.totalorder %s30, 1
      %p268 = por %p266, %p267
      %p270 = scmp.ne.s32.totalorder %s255, %s269
      %p271 = scmp.eq.s32.totalorder %s30, 0
      %p272 = por %p270, %p271
      %s274 = sadd.s32 %s273, 1
      %p277 = scmp.eq.s32.totalorder %s24, 1
      %p278 = scmp.ne.s32.totalorder %s273, %s275
      %p279 = scmp.eq.s32.totalorder %s24, 0
      %p280 = por %p278, %p279
      %p281 = scmp.ne.s32.totalorder %s273, %s275
      %p282 = scmp.eq.s32.totalorder %s29, 1
      %p283 = por %p281, %p282
      %p284 = scmp.ne.s32.totalorder %s275, %s276
      %p285 = scmp.eq.s32.totalorder %s29, 0
      %p286 = por %p284, %p285
      %p287 = scmp.ne.s32.totalorder %s275, %s276
      %p288 = scmp.eq.s32.totalorder %s30, 1
      %p289 = por %p287, %p288
      %p291 = scmp.ne.s32.totalorder %s276, %s290
      %p292 = scmp.eq.s32.totalorder %s30, 0
      %p293 = por %p291, %p292
      %s295 = sadd.s32 %s294, 1
      %p298 = scmp.eq.s32.totalorder %s24, 1
      %p299 = scmp.ne.s32.totalorder %s294, %s296
      %p300 = scmp.eq.s32.totalorder %s24, 0
      %p301 = por %p299, %p300
      %p302 = scmp.ne.s32.totalorder %s294, %s296
      %p303 = scmp.eq.s32.totalorder %s29, 1
      %p304 = por %p302, %p303
      %p305 = scmp.ne.s32.totalorder %s296, %s297
      %p306 = scmp.eq.s32.totalorder %s29, 0
      %p307 = por %p305, %p306
      %p308 = scmp.ne.s32.totalorder %s296, %s297
      %p309 = scmp.eq.s32.totalorder %s30, 1
      %p310 = por %p308, %p309
      %p312 = scmp.ne.s32.totalorder %s297, %s311
      %p313 = scmp.eq.s32.totalorder %s30, 0
      %p314 = por %p312, %p313
      %s315 = ssub.s32 %s24, %s31
      %p316 = scmp.eq.s32.totalorder %s315, 0
      %s318 = sadd.s32 %s317, 1
      %s319 = scalar_select %p316, %s317, %s318
      %p322 = pneg %p316
      %p323 = scmp.eq.s32.totalorder %s24, 1
      %p324 = por %p322, %p323
      %p325 = scmp.ne.s32.totalorder %s317, %s320
      %p326 = scmp.eq.s32.totalorder %s24, 0
      %p327 = por %p325, %p326
      %p328 = scmp.ne.s32.totalorder %s317, %s320
      %p329 = scmp.eq.s32.totalorder %s29, 1
      %p330 = por %p328, %p329
      %p331 = scmp.ne.s32.totalorder %s320, %s321
      %p332 = scmp.eq.s32.totalorder %s29, 0
      %p333 = por %p331, %p332
      %p334 = scmp.ne.s32.totalorder %s320, %s321
      %p335 = scmp.eq.s32.totalorder %s30, 1
      %p336 = por %p334, %p335
      %p338 = scmp.ne.s32.totalorder %s321, %s337
      %p339 = scmp.eq.s32.totalorder %s30, 0
      %p340 = por %p338, %p339
      %p341 = scmp.le.s32.totalorder 1, %s24
      %p342 = scmp.lt.s32.totalorder %s24, 3
      %p343 = pnand %p341, %p342
      %p344 = pneg %p343
      // Predicated region
      $region9: #{tpu_custom_call.1} parent=5 // pred_check
        _
      $region10: #{tpu_custom_call.1} parent=5 // pred_check_branch
        %346 = sbr.rel (%p343) target = $region12
      $region11: #{tpu_custom_call.1} parent=5 // pred_region
        %s347 = ssub.s32 %s24, 1
        // Predicated region
        $region13: #{tpu_custom_call.1} parent=11 // pred_check
          %p348 = pneg %p97
        $region14: #{tpu_custom_call.1} parent=11 // pred_check_branch
          %350 = sbr.rel (%p348) target = $region16
        $region15: #{tpu_custom_call.1} parent=11 // pred_region
          %s352 = ssub.s32 3072, 3072
          %353 = vsyncadd [#allocation3], %s352
          %s354 = sshll.u32 [#allocation2], 4
          %s355 = int_to_ptr.vmem [resolvable:$true] %s354
          %360 = dma.hbm_to_vmem [thread:$0]  %s2, 3072, %s355, [#allocation3], 384, 384, 24
        $region16: #{tpu_custom_call.1} parent=11 // pred_fallthru
          _
        // Predicated region
        $region17: #{tpu_custom_call.1} parent=11 // pred_check
          %p361 = pneg %p118
        $region18: #{tpu_custom_call.1} parent=11 // pred_check_branch
          %363 = sbr.rel (%p361) target = $region20
        $region19: #{tpu_custom_call.1} parent=11 // pred_region
          %s365 = ssub.s32 64, 64
          %366 = vsyncadd [#allocation6], %s365
          %s368 = sshll.u32 [#allocation5], 4
          %s369 = int_to_ptr.vmem [resolvable:$true] %s368
          %371 = dma.hbm_to_vmem [thread:$0]  %s3, 64, %s369, [#allocation6]
        $region20: #{tpu_custom_call.1} parent=11 // pred_fallthru
          _
        // Predicated region
        $region21: #{tpu_custom_call.1} parent=11 // pred_check
          %p372 = pneg %p139
        $region22: #{tpu_custom_call.1} parent=11 // pred_check_branch
          %374 = sbr.rel (%p372) target = $region24
        $region23: #{tpu_custom_call.1} parent=11 // pred_region
          _
        $region24: #{tpu_custom_call.1} parent=11 // pred_fallthru
          _
        // Predicated region
        $region25: #{tpu_custom_call.1} parent=11 // pred_check
          %p375 = pneg %p160
        $region26: #{tpu_custom_call.1} parent=11 // pred_check_branch
          %377 = sbr.rel (%p375) target = $region28
        $region27: #{tpu_custom_call.1} parent=11 // pred_region
          _
        $region28: #{tpu_custom_call.1} parent=11 // pred_fallthru
          _
        // Predicated region
        $region29: #{tpu_custom_call.1} parent=11 // pred_check
          %p378 = pneg %p181
        $region30: #{tpu_custom_call.1} parent=11 // pred_check_branch
          %380 = sbr.rel (%p378) target = $region32
        $region31: #{tpu_custom_call.1} parent=11 // pred_region
          _
        $region32: #{tpu_custom_call.1} parent=11 // pred_fallthru
          _
        // Predicated region
        $region33: #{tpu_custom_call.1} parent=11 // pred_check
          %p381 = pneg %p202
        $region34: #{tpu_custom_call.1} parent=11 // pred_check_branch
          %383 = sbr.rel (%p381) target = $region36
        $region35: #{tpu_custom_call.1} parent=11 // pred_region
          _
        $region36: #{tpu_custom_call.1} parent=11 // pred_fallthru
          _
        // Predicated region
        $region37: #{tpu_custom_call.1} parent=11 // pred_check
          %p384 = pneg %p223
        $region38: #{tpu_custom_call.1} parent=11 // pred_check_branch
          %386 = sbr.rel (%p384) target = $region40
        $region39: #{tpu_custom_call.1} parent=11 // pred_region
          _
        $region40: #{tpu_custom_call.1} parent=11 // pred_fallthru
          _
        // Predicated region
        $region41: #{tpu_custom_call.1} parent=11 // pred_check
          %p387 = pneg %p244
        $region42: #{tpu_custom_call.1} parent=11 // pred_check_branch
          %389 = sbr.rel (%p387) target = $region44
        $region43: #{tpu_custom_call.1} parent=11 // pred_region
          _
        $region44: #{tpu_custom_call.1} parent=11 // pred_fallthru
          _
        // Predicated region
        $region45: #{tpu_custom_call.1} parent=11 // pred_check
          %p390 = pneg %p265
        $region46: #{tpu_custom_call.1} parent=11 // pred_check_branch
          %392 = sbr.rel (%p390) target = $region48
        $region47: #{tpu_custom_call.1} parent=11 // pred_region
          _
        $region48: #{tpu_custom_call.1} parent=11 // pred_fallthru
          _
        // Predicated region
        $region49: #{tpu_custom_call.1} parent=11 // pred_check
          %p393 = pneg %p286
        $region50: #{tpu_custom_call.1} parent=11 // pred_check_branch
          %395 = sbr.rel (%p393) target = $region52
        $region51: #{tpu_custom_call.1} parent=11 // pred_region
          _
        $region52: #{tpu_custom_call.1} parent=11 // pred_fallthru
          _
        // Predicated region
        $region53: #{tpu_custom_call.1} parent=11 // pred_check
          %p396 = pneg %p307
        $region54: #{tpu_custom_call.1} parent=11 // pred_check_branch
          %398 = sbr.rel (%p396) target = $region56
        $region55: #{tpu_custom_call.1} parent=11 // pred_region
          _
        $region56: #{tpu_custom_call.1} parent=11 // pred_fallthru
          _
      $region12: #{tpu_custom_call.1} parent=5 // pred_fallthru
        _
      %p399 = scmp.lt.s32.totalorder %s24, 2
      // Predicated region
      $region57: #{tpu_custom_call.1} parent=5 // pred_check
        %p400 = pneg %p399
      $region58: #{tpu_custom_call.1} parent=5 // pred_check_branch
        %402 = sbr.rel (%p400) target = $region60
      $region59: #{tpu_custom_call.1} parent=5 // pred_region
        // Predicated region
        $region61: #{tpu_custom_call.1} parent=59 // pred_check
          %p403 = pneg %p44
        $region62: #{tpu_custom_call.1} parent=59 // pred_check_branch
          %405 = sbr.rel (%p403) target = $region64
        $region63: #{tpu_custom_call.1} parent=59 // pred_region
          %p406 = scmp.lt.s32.totalorder %s24, 1
          %s407 = scalar_select %p406, %s24, 1
          %s408 = smul.addr %s407, 8
          %s409 = scalar_lea.vmem %s0, %s408
        $region64: #{tpu_custom_call.1} parent=59 // pred_fallthru
          _
        // Predicated region
        $region65: #{tpu_custom_call.1} parent=59 // pred_check
          %p410 = pneg %p70
        $region66: #{tpu_custom_call.1} parent=59 // pred_check_branch
          %412 = sbr.rel (%p410) target = $region68
        $region67: #{tpu_custom_call.1} parent=59 // pred_region
          %p413 = scmp.lt.s32.totalorder %s24, 1
          %s414 = scalar_select %p413, %s24, 1
          %s415 = smul.addr %s414, 3
          %s416 = smul.addr %s415, 4
          %s417 = scalar_lea.vmem %s1, %s416
        $region68: #{tpu_custom_call.1} parent=59 // pred_fallthru
          _
      $region60: #{tpu_custom_call.1} parent=5 // pred_fallthru
        _
      %p418 = scmp.le.s32.totalorder 1, %s24
      %p419 = scmp.lt.s32.totalorder %s24, 3
      %p420 = pnand %p418, %p419
      %p421 = pneg %p420
      // Predicated region
      $region69: #{tpu_custom_call.1} parent=5 // pred_check
        _
      $region70: #{tpu_custom_call.1} parent=5 // pred_check_branch
        %423 = sbr.rel (%p420) target = $region72
      $region71: #{tpu_custom_call.1} parent=5 // pred_region
        %s424 = ssub.s32 %s24, 1
        // Predicated region
        $region73: #{tpu_custom_call.1} parent=71 // pred_check
          %p425 = pneg %p97
        $region74: #{tpu_custom_call.1} parent=71 // pred_check_branch
          %427 = sbr.rel (%p425) target = $region76
        $region75: #{tpu_custom_call.1} parent=71 // pred_region
          %428 = dma.done [#allocation3], 3072
        $region76: #{tpu_custom_call.1} parent=71 // pred_fallthru
          _
        // Predicated region
        $region77: #{tpu_custom_call.1} parent=71 // pred_check
          %p429 = pneg %p118
        $region78: #{tpu_custom_call.1} parent=71 // pred_check_branch
          %431 = sbr.rel (%p429) target = $region80
        $region79: #{tpu_custom_call.1} parent=71 // pred_region
          %432 = dma.done [#allocation6], 64
        $region80: #{tpu_custom_call.1} parent=71 // pred_fallthru
          _
        %p433 = scmp.lt.s32.totalorder %s29, 1
        %s434 = scalar_select %p433, %s29, 1
        %s435 = smul.addr %s434, 8
        %s436 = scalar_lea.vmem %s0, %s435
        %p437 = pneg %p50
        %p438 = pneg %p47
        %p439 = scmp.lt.s32.totalorder %s29, 1
        %s440 = scalar_select %p439, %s29, 1
        %s441 = smul.addr %s440, 3
        %s442 = smul.addr %s441, 4
        %s443 = scalar_lea.vmem %s1, %s442
        %p444 = pneg %p76
        %p445 = pneg %p73
        %p446 = pneg %p97
        %p447 = pneg %p94
        %p448 = pneg %p118
        %p449 = pneg %p115
        %p450 = pneg %p139
        %p451 = pneg %p136
        %p452 = pneg %p160
        %p453 = pneg %p157
        %p454 = pneg %p181
        %p455 = pneg %p178
        %p456 = pneg %p202
        %p457 = pneg %p199
        %p458 = pneg %p223
        %p459 = pneg %p220
        %p460 = pneg %p244
        %p461 = pneg %p241
        %p462 = pneg %p265
        %p463 = pneg %p262
        %p464 = pneg %p286
        %p465 = pneg %p283
        %p466 = pneg %p307
        %p467 = pneg %p304
        %p468 = pneg %p333
        %p469 = pneg %p330
        %s470 = sand.u32 %s320, 1
        %s471 = scalar_lea.sflag [#allocation4], %s470
        %s472 = sand.u32 %s320, 1
        %s473 = smul.addr %s472, 24
        %s474 = scalar_lea.vmem [#allocation7], %s473
        %p475 = scmp.lt.s32.totalorder %s29, 1
        %s476 = scalar_select %p475, %s29, 1
        %s477 = smul.addr %s476, 8
        %s478 = scalar_lea.vmem %s0, %s477
        %p479 = scmp.lt.s32.totalorder %s29, 1
        %s480 = scalar_select %p479, %s29, 1
        %s481 = smul.addr %s480, 3
        %s482 = smul.addr %s481, 4
        %s483 = scalar_lea.vmem %s1, %s482
        %v484 = vld [vmem:[#allocation5] sm:$0xf]
        %v485 = vld [vmem:[%s478] sm:$0xff]
        %vm486 = vcmask 64512
        %v488 = vsel %vm486, %v484, 0
        %490 = vmatprep.subr.mxu0 0.0
        %491 = vmatpush1.msra.mxu0 %v485
        %492 = vmatprep.subr.mxu0 0.0
        %493 = vmatpush1.msra.mxu0 0.0
        %494 = vmatprep.subr.mxu0 0.0
        %495 = vmatpush1.msra.mxu0 0.0
        %496 = vmatprep.subr.mxu0 0.0
        %497 = vmatpush1.msra.mxu0 0.0
        %498 = vmatprep.subr.mxu0 0.0
        %499 = vmatpush1.msra.mxu0 0.0
        %500 = vmatprep.subr.mxu0 0.0
        %501 = vmatpush1.msra.mxu0 0.0
        %502 = vmatprep.subr.mxu0 0.0
        %503 = vmatpush1.msra.mxu0 0.0
        %504 = vmatprep.subr.mxu0 0.0
        %505 = vmatpush1.msra.mxu0 0.0
        %506 = vmatprep.subr.mxu0 0.0
        %507 = vmatpush1.msra.mxu0 0.0
        %508 = vmatprep.subr.mxu0 0.0
        %509 = vmatpush1.msra.mxu0 0.0
        %510 = vmatprep.subr.mxu0 0.0
        %511 = vmatpush1.msra.mxu0 0.0
        %512 = vmatprep.subr.mxu0 0.0
        %513 = vmatpush1.msra.mxu0 0.0
        %514 = vmatprep.subr.mxu0 0.0
        %515 = vmatpush1.msra.mxu0 0.0
        %516 = vmatprep.subr.mxu0 0.0
        %517 = vmatpush1.msra.mxu0 0.0
        %518 = vmatprep.subr.mxu0 0.0
        %519 = vmatpush1.msra.mxu0 0.0
        %520 = vmatprep.subr.mxu0 0.0
        %521 = vmatpush1.msra.mxu0 0.0
        %522 = vmatprep.subr.mxu0 0.0
        %523 = vmatpush1.msra.mxu0 0.0
        %524 = vmatprep.subr.mxu0 0.0
        %525 = vmatpush1.msra.mxu0 0.0
        %526 = vmatprep.subr.mxu0 0.0
        %527 = vmatpush1.msra.mxu0 0.0
        %528 = vmatprep.subr.mxu0 0.0
        %529 = vmatpush1.msra.mxu0 0.0
        %530 = vmatprep.subr.mxu0 0.0
        %531 = vmatpush1.msra.mxu0 0.0
        %532 = vmatprep.subr.mxu0 0.0
        %533 = vmatpush1.msra.mxu0 0.0
        %534 = vmatprep.subr.mxu0 0.0
        %535 = vmatpush1.msra.mxu0 0.0
        %536 = vmatprep.subr.mxu0 0.0
        %537 = vmatpush1.msra.mxu0 0.0
        %538 = vmatprep.subr.mxu0 0.0
        %539 = vmatpush1.msra.mxu0 0.0
        %540 = vmatprep.subr.mxu0 0.0
        %541 = vmatpush1.msra.mxu0 0.0
        %542 = vmatprep.subr.mxu0 0.0
        %543 = vmatpush1.msra.mxu0 0.0
        %544 = vmatprep.subr.mxu0 0.0
        %545 = vmatpush1.msra.mxu0 0.0
        %546 = vmatprep.subr.mxu0 0.0
        %547 = vmatpush1.msra.mxu0 0.0
        %548 = vmatprep.subr.mxu0 0.0
        %549 = vmatpush1.msra.mxu0 0.0
        %550 = vmatprep.subr.mxu0 0.0
        %551 = vmatpush1.msra.mxu0 0.0
        %552 = vmatprep.subr.mxu0 0.0
        %553 = vmatpush1.msra.mxu0 0.0
        %554 = vmatprep.mubr.f32.mxu0 0.0
        %555 = vmatmul.mubr.f32.gmra.mrb[0].mxu0 %v488
        %v556 = vpop.f32.mrb[0].mxu0
        %v557 = vadd.f32 0.0, %v556
        %v558 = vpop.f32.mrb[0].mxu0
        %559 = vdwg.mxu0
        %v560 = vld [vmem:[%s4] sm:$0xf]
        %562 = vset.pattern.permute.xlu0 0
        %563 = vperm.xlu0 %562, %v560
        %v564 = vpop.permute.xlu0 %563
        %v566 = vmul.f32 %v557, %v564
        %v567 = vld [vmem:[%s5] sm:$0xf]
        %569 = vset.pattern.permute.xlu0 0
        %570 = vperm.xlu0 %569, %v567
        %v571 = vpop.permute.xlu0 %570
        %v573 = vadd.f32 %v566, %v571
        %v574 = vmax.f32 %v573, 0.0
        %v575 = vld [vmem:[#allocation2] sm:$0xff]
        %v576 = vld [vmem:[#allocation2 + $0x8] sm:$0xff]
        %v577 = vld [vmem:[#allocation2 + $0x10] sm:$0xff]
        %v578 = vld [vmem:[#allocation2 + $0x18] sm:$0xff]
        %v579 = vld [vmem:[#allocation2 + $0x20] sm:$0xff]
        %v580 = vld [vmem:[#allocation2 + $0x28] sm:$0xff]
        %v581 = vld [vmem:[#allocation2 + $0x30] sm:$0xff]
        %v582 = vld [vmem:[#allocation2 + $0x38] sm:$0xff]
        %v583 = vld [vmem:[#allocation2 + $0x40] sm:$0xff]
        %v584 = vld [vmem:[#allocation2 + $0x48] sm:$0xff]
        %v585 = vld [vmem:[#allocation2 + $0x50] sm:$0xff]
        %v586 = vld [vmem:[#allocation2 + $0x58] sm:$0xff]
        %v587 = vld [vmem:[#allocation2 + $0x60] sm:$0xff]
        %v588 = vld [vmem:[#allocation2 + $0x68] sm:$0xff]
        %v589 = vld [vmem:[#allocation2 + $0x70] sm:$0xff]
        %v590 = vld [vmem:[#allocation2 + $0x78] sm:$0xff]
        %v591 = vld [vmem:[#allocation2 + $0x80] sm:$0xff]
        %v592 = vld [vmem:[#allocation2 + $0x88] sm:$0xff]
        %v593 = vld [vmem:[#allocation2 + $0x90] sm:$0xff]
        %v594 = vld [vmem:[#allocation2 + $0x98] sm:$0xff]
        %v595 = vld [vmem:[#allocation2 + $0xa0] sm:$0xff]
        %v596 = vld [vmem:[#allocation2 + $0xa8] sm:$0xff]
        %v597 = vld [vmem:[#allocation2 + $0xb0] sm:$0xff]
        %v598 = vld [vmem:[#allocation2 + $0xb8] sm:$0xff]
        %vm599 = vcmask 523264
        %v601 = vsel %vm599, %v574, 0
        %603 = vmatprep.subr.mxu0 %v576
        %604 = vmatpush1.msra.mxu0 %v575
        %605 = vmatprep.subr.mxu0 %v579
        %606 = vmatpush1.msra.mxu0 %v578
        %607 = vmatprep.subr.mxu0 %v582
        %608 = vmatpush1.msra.mxu0 %v581
        %609 = vmatprep.subr.mxu0 %v585
        %610 = vmatpush1.msra.mxu0 %v584
        %611 = vmatprep.subr.mxu0 %v588
        %612 = vmatpush1.msra.mxu0 %v587
        %613 = vmatprep.subr.mxu0 %v591
        %614 = vmatpush1.msra.mxu0 %v590
        %615 = vmatprep.subr.mxu0 %v594
        %616 = vmatpush1.msra.mxu0 %v593
        %617 = vmatprep.subr.mxu0 %v597
        %618 = vmatpush1.msra.mxu0 %v596
        %619 = vmatprep.subr.mxu0 0.0
        %620 = vmatpush1.msra.mxu0 0.0
        %621 = vmatprep.subr.mxu0 0.0
        %622 = vmatpush1.msra.mxu0 0.0
        %623 = vmatprep.subr.mxu0 0.0
        %624 = vmatpush1.msra.mxu0 0.0
        %625 = vmatprep.subr.mxu0 0.0
        %626 = vmatpush1.msra.mxu0 0.0
        %627 = vmatprep.subr.mxu0 0.0
        %628 = vmatpush1.msra.mxu0 0.0
        %629 = vmatprep.subr.mxu0 0.0
        %630 = vmatpush1.msra.mxu0 0.0
        %631 = vmatprep.subr.mxu0 0.0
        %632 = vmatpush1.msra.mxu0 0.0
        %633 = vmatprep.subr.mxu0 0.0
        %634 = vmatpush1.msra.mxu0 0.0
        %635 = vmatprep.subr.mxu0 0.0
        %636 = vmatpush1.msra.mxu0 0.0
        %637 = vmatprep.subr.mxu0 0.0
        %638 = vmatpush1.msra.mxu0 0.0
        %639 = vmatprep.subr.mxu0 0.0
        %640 = vmatpush1.msra.mxu0 0.0
        %641 = vmatprep.subr.mxu0 0.0
        %642 = vmatpush1.msra.mxu0 0.0
        %643 = vmatprep.subr.mxu0 0.0
        %644 = vmatpush1.msra.mxu0 0.0
        %645 = vmatprep.subr.mxu0 0.0
        %646 = vmatpush1.msra.mxu0 0.0
        %647 = vmatprep.subr.mxu0 0.0
        %648 = vmatpush1.msra.mxu0 0.0
        %649 = vmatprep.subr.mxu0 0.0
        %650 = vmatpush1.msra.mxu0 0.0
        %651 = vmatprep.subr.mxu0 0.0
        %652 = vmatpush1.msra.mxu0 0.0
        %653 = vmatprep.subr.mxu0 0.0
        %654 = vmatpush1.msra.mxu0 0.0
        %655 = vmatprep.subr.mxu0 0.0
        %656 = vmatpush1.msra.mxu0 0.0
        %657 = vmatprep.subr.mxu0 0.0
        %658 = vmatpush1.msra.mxu0 0.0
        %659 = vmatprep.subr.mxu0 0.0
        %660 = vmatpush1.msra.mxu0 0.0
        %661 = vmatprep.subr.mxu0 0.0
        %662 = vmatpush1.msra.mxu0 0.0
        %663 = vmatprep.subr.mxu0 0.0
        %664 = vmatpush1.msra.mxu0 0.0
        %665 = vmatprep.subr.mxu0 0.0
        %666 = vmatpush1.msra.mxu0 0.0
        %667 = vmatprep.mubr.f32.mxu0 0.0
        %668 = vmatmul.mubr.f32.gmra.mrb[0].mxu0 %v601
        %v669 = vpop.f32.mrb[0].mxu0
        %v670 = vadd.f32 0.0, %v669
        %v671 = vpop.f32.mrb[0].mxu0
        %v672 = vadd.f32 0.0, %v671
        %673 = vdwg.mxu0
        %674 = vmatprep.subr.mxu0 0.0
        %675 = vmatpush1.msra.mxu0 %v577
        %676 = vmatprep.subr.mxu0 0.0
        %677 = vmatpush1.msra.mxu0 %v580
        %678 = vmatprep.subr.mxu0 0.0
        %679 = vmatpush1.msra.mxu0 %v583
        %680 = vmatprep.subr.mxu0 0.0
        %681 = vmatpush1.msra.mxu0 %v586
        %682 = vmatprep.subr.mxu0 0.0
        %683 = vmatpush1.msra.mxu0 %v589
        %684 = vmatprep.subr.mxu0 0.0
        %685 = vmatpush1.msra.mxu0 %v592
        %686 = vmatprep.subr.mxu0 0.0
        %687 = vmatpush1.msra.mxu0 %v595
        %688 = vmatprep.subr.mxu0 0.0
        %689 = vmatpush1.msra.mxu0 %v598
        %690 = vmatprep.subr.mxu0 0.0
        %691 = vmatpush1.msra.mxu0 0.0
        %692 = vmatprep.subr.mxu0 0.0
        %693 = vmatpush1.msra.mxu0 0.0
        %694 = vmatprep.subr.mxu0 0.0
        %695 = vmatpush1.msra.mxu0 0.0
        %696 = vmatprep.subr.mxu0 0.0
        %697 = vmatpush1.msra.mxu0 0.0
        %698 = vmatprep.subr.mxu0 0.0
        %699 = vmatpush1.msra.mxu0 0.0
        %700 = vmatprep.subr.mxu0 0.0
        %701 = vmatpush1.msra.mxu0 0.0
        %702 = vmatprep.subr.mxu0 0.0
        %703 = vmatpush1.msra.mxu0 0.0
        %704 = vmatprep.subr.mxu0 0.0
        %705 = vmatpush1.msra.mxu0 0.0
        %706 = vmatprep.subr.mxu0 0.0
        %707 = vmatpush1.msra.mxu0 0.0
        %708 = vmatprep.subr.mxu0 0.0
        %709 = vmatpush1.msra.mxu0 0.0
        %710 = vmatprep.subr.mxu0 0.0
        %711 = vmatpush1.msra.mxu0 0.0
        %712 = vmatprep.subr.mxu0 0.0
        %713 = vmatpush1.msra.mxu0 0.0
        %714 = vmatprep.subr.mxu0 0.0
        %715 = vmatpush1.msra.mxu0 0.0
        %716 = vmatprep.subr.mxu0 0.0
        %717 = vmatpush1.msra.mxu0 0.0
        %718 = vmatprep.subr.mxu0 0.0
        %719 = vmatpush1.msra.mxu0 0.0
        %720 = vmatprep.subr.mxu0 0.0
        %721 = vmatpush1.msra.mxu0 0.0
        %722 = vmatprep.subr.mxu0 0.0
        %723 = vmatpush1.msra.mxu0 0.0
        %724 = vmatprep.subr.mxu0 0.0
        %725 = vmatpush1.msra.mxu0 0.0
        %726 = vmatprep.subr.mxu0 0.0
        %727 = vmatpush1.msra.mxu0 0.0
        %728 = vmatprep.subr.mxu0 0.0
        %729 = vmatpush1.msra.mxu0 0.0
        %730 = vmatprep.subr.mxu0 0.0
        %731 = vmatpush1.msra.mxu0 0.0
        %732 = vmatprep.subr.mxu0 0.0
        %733 = vmatpush1.msra.mxu0 0.0
        %734 = vmatprep.subr.mxu0 0.0
        %735 = vmatpush1.msra.mxu0 0.0
        %736 = vmatprep.subr.mxu0 0.0
        %737 = vmatpush1.msra.mxu0 0.0
        %738 = vmatprep.mubr.f32.mxu0 0.0
        %739 = vmatmul.mubr.f32.gmra.mrb[0].mxu0 %v601
        %v740 = vpop.f32.mrb[0].mxu0
        %v741 = vadd.f32 0.0, %v740
        %v742 = vpop.f32.mrb[0].mxu0
        %743 = vdwg.mxu0
        %v744 = vld [vmem:[%s483] sm:$0xff]
        %v745 = vld [vmem:[%s483 + $0x8] sm:$0xf]
        %v747 = vcombine.high %v744, %v744
        %v752 = vrot.slane %v670, 4
        %v753 = vrot.slane %v672, 4
        %v754 = vrot.slane %v741, 4
        %vm758 = vcmask 1043456
        %v759 = vsel %vm758, %v744, %v752
        %v760 = vsel %vm758, %v747, %v753
        %v761 = vsel %vm758, %v745, %v754
        %v762 = vld [vmem:[%s6] sm:$0xff]
        %v763 = vld [vmem:[%s7] sm:$0xff]
        %v764 = vld [vmem:[%s8] sm:$0xff]
        %765 = vrot.lane.b32.xlu0 %v759, 19
        %v766 = vpop.permute.xlu0 %765
        %767 = vrot.lane.b32.xlu0 %v760, 19
        %v768 = vpop.permute.xlu0 %767
        %769 = vrot.lane.b32.xlu0 %v761, 19
        %v770 = vpop.permute.xlu0 %769
        %v771 = vlaneseq
        %v772 = vand.u32 %v771, 127
        %vm773 = vcmp.lt.s32.totalorder %v772, 19
        %v774 = vsel %vm773, %v768, %v770
        %v775 = vsel %vm773, %v766, %v768
        %v776 = vsel %vm773, %v770, %v766
        %777 = vrot.lane.b32.xlu0 %v759, 18
        %v778 = vpop.permute.xlu0 %777
        %779 = vrot.lane.b32.xlu0 %v760, 18
        %v780 = vpop.permute.xlu0 %779
        %781 = vrot.lane.b32.xlu0 %v761, 18
        %v782 = vpop.permute.xlu0 %781
        %vm783 = vcmp.lt.s32.totalorder %v772, 18
        %v784 = vsel %vm783, %v780, %v782
        %v785 = vsel %vm783, %v778, %v780
        %v786 = vsel %vm783, %v782, %v778
        %787 = vrot.lane.b32.xlu0 %v759, 17
        %v788 = vpop.permute.xlu0 %787
        %789 = vrot.lane.b32.xlu0 %v760, 17
        %v790 = vpop.permute.xlu0 %789
        %791 = vrot.lane.b32.xlu0 %v761, 17
        %v792 = vpop.permute.xlu0 %791
        %vm793 = vcmp.lt.s32.totalorder %v772, 17
        %v794 = vsel %vm793, %v790, %v792
        %v795 = vsel %vm793, %v788, %v790
        %v796 = vsel %vm793, %v792, %v788
        %797 = vrot.lane.b32.xlu0 %v759, 1
        %v798 = vpop.permute.xlu0 %797
        %799 = vrot.lane.b32.xlu0 %v760, 1
        %v800 = vpop.permute.xlu0 %799
        %801 = vrot.lane.b32.xlu0 %v761, 1
        %v802 = vpop.permute.xlu0 %801
        %vm803 = vcmp.lt.s32.totalorder %v772, 1
        %v804 = vsel %vm803, %v800, %v802
        %v805 = vsel %vm803, %v798, %v800
        %v806 = vsel %vm803, %v802, %v798
        %807 = vrot.lane.b32.xlu0 %v759, 127
        %v808 = vpop.permute.xlu0 %807
        %809 = vrot.lane.b32.xlu0 %v760, 127
        %v810 = vpop.permute.xlu0 %809
        %811 = vrot.lane.b32.xlu0 %v761, 127
        %v812 = vpop.permute.xlu0 %811
        %vm813 = vcmp.lt.s32.totalorder %v772, 127
        %v814 = vsel %vm813, %v810, %v812
        %v815 = vsel %vm813, %v808, %v810
        %v816 = vsel %vm813, %v812, %v808
        %817 = vrot.lane.b32.xlu0 %v759, 111
        %v818 = vpop.permute.xlu0 %817
        %819 = vrot.lane.b32.xlu0 %v760, 111
        %v820 = vpop.permute.xlu0 %819
        %821 = vrot.lane.b32.xlu0 %v761, 111
        %v822 = vpop.permute.xlu0 %821
        %vm823 = vcmp.lt.s32.totalorder %v772, 111
        %v824 = vsel %vm823, %v820, %v822
        %v825 = vsel %vm823, %v818, %v820
        %v826 = vsel %vm823, %v822, %v818
        %827 = vrot.lane.b32.xlu0 %v759, 110
        %v828 = vpop.permute.xlu0 %827
        %829 = vrot.lane.b32.xlu0 %v760, 110
        %v830 = vpop.permute.xlu0 %829
        %831 = vrot.lane.b32.xlu0 %v761, 110
        %v832 = vpop.permute.xlu0 %831
        %vm833 = vcmp.lt.s32.totalorder %v772, 110
        %v834 = vsel %vm833, %v830, %v832
        %v835 = vsel %vm833, %v828, %v830
        %v836 = vsel %vm833, %v832, %v828
        %837 = vrot.lane.b32.xlu0 %v759, 109
        %v838 = vpop.permute.xlu0 %837
        %839 = vrot.lane.b32.xlu0 %v760, 109
        %v840 = vpop.permute.xlu0 %839
        %841 = vrot.lane.b32.xlu0 %v761, 109
        %v842 = vpop.permute.xlu0 %841
        %vm843 = vcmp.lt.s32.totalorder %v772, 109
        %v844 = vsel %vm843, %v840, %v842
        %v845 = vsel %vm843, %v838, %v840
        %v846 = vsel %vm843, %v842, %v838
        %vm847 = vcmask 588800
        %v849 = vsel %vm847, %v762, 0
        %851 = vmatprep.subr.mxu0 %v775
        %852 = vmatpush1.msra.mxu0 %v776
        %853 = vmatprep.subr.mxu0 %v785
        %854 = vmatpush1.msra.mxu0 %v786
        %855 = vmatprep.subr.mxu0 %v795
        %856 = vmatpush1.msra.mxu0 %v796
        %857 = vmatprep.subr.mxu0 %v805
        %858 = vmatpush1.msra.mxu0 %v806
        %859 = vmatprep.subr.mxu0 %v760
        %860 = vmatpush1.msra.mxu0 %v759
        %861 = vmatprep.subr.mxu0 %v814
        %862 = vmatpush1.msra.mxu0 %v815
        %863 = vmatprep.subr.mxu0 %v824
        %864 = vmatpush1.msra.mxu0 %v825
        %865 = vmatprep.subr.mxu0 %v834
        %866 = vmatpush1.msra.mxu0 %v835
        %867 = vmatprep.subr.mxu0 %v844
        %868 = vmatpush1.msra.mxu0 %v845
        %869 = vmatprep.subr.mxu0 0.0
        %870 = vmatpush1.msra.mxu0 0.0
        %871 = vmatprep.subr.mxu0 0.0
        %872 = vmatpush1.msra.mxu0 0.0
        %873 = vmatprep.subr.mxu0 0.0
        %874 = vmatpush1.msra.mxu0 0.0
        %875 = vmatprep.subr.mxu0 0.0
        %876 = vmatpush1.msra.mxu0 0.0
        %877 = vmatprep.subr.mxu0 0.0
        %878 = vmatpush1.msra.mxu0 0.0
        %879 = vmatprep.subr.mxu0 0.0
        %880 = vmatpush1.msra.mxu0 0.0
        %881 = vmatprep.subr.mxu0 0.0
        %882 = vmatpush1.msra.mxu0 0.0
        %883 = vmatprep.subr.mxu0 0.0
        %884 = vmatpush1.msra.mxu0 0.0
        %885 = vmatprep.subr.mxu0 0.0
        %886 = vmatpush1.msra.mxu0 0.0
        %887 = vmatprep.subr.mxu0 0.0
        %888 = vmatpush1.msra.mxu0 0.0
        %889 = vmatprep.subr.mxu0 0.0
        %890 = vmatpush1.msra.mxu0 0.0
        %891 = vmatprep.subr.mxu0 0.0
        %892 = vmatpush1.msra.mxu0 0.0
        %893 = vmatprep.subr.mxu0 0.0
        %894 = vmatpush1.msra.mxu0 0.0
        %895 = vmatprep.subr.mxu0 0.0
        %896 = vmatpush1.msra.mxu0 0.0
        %897 = vmatprep.subr.mxu0 0.0
        %898 = vmatpush1.msra.mxu0 0.0
        %899 = vmatprep.subr.mxu0 0.0
        %900 = vmatpush1.msra.mxu0 0.0
        %901 = vmatprep.subr.mxu0 0.0
        %902 = vmatpush1.msra.mxu0 0.0
        %903 = vmatprep.subr.mxu0 0.0
        %904 = vmatpush1.msra.mxu0 0.0
        %905 = vmatprep.subr.mxu0 0.0
        %906 = vmatpush1.msra.mxu0 0.0
        %907 = vmatprep.subr.mxu0 0.0
        %908 = vmatpush1.msra.mxu0 0.0
        %909 = vmatprep.subr.mxu0 0.0
        %910 = vmatpush1.msra.mxu0 0.0
        %911 = vmatprep.subr.mxu0 0.0
        %912 = vmatpush1.msra.mxu0 0.0
        %913 = vmatprep.subr.mxu0 0.0
        %914 = vmatpush1.msra.mxu0 0.0
        %915 = vmatprep.mubr.f32.mxu0 0.0
        %916 = vmatmul.mubr.f32.gmra.mrb[0].mxu0 %v849
        %v917 = vpop.f32.mrb[0].mxu0
        %v918 = vadd.f32 0.0, %v917
        %v919 = vpop.f32.mrb[0].mxu0
        %v920 = vadd.f32 0.0, %v919
        %921 = vdwg.mxu0
        %922 = vmatprep.subr.mxu0 0.0
        %923 = vmatpush1.msra.mxu0 %v774
        %924 = vmatprep.subr.mxu0 0.0
        %925 = vmatpush1.msra.mxu0 %v784
        %926 = vmatprep.subr.mxu0 0.0
        %927 = vmatpush1.msra.mxu0 %v794
        %928 = vmatprep.subr.mxu0 0.0
        %929 = vmatpush1.msra.mxu0 %v804
        %930 = vmatprep.subr.mxu0 0.0
        %931 = vmatpush1.msra.mxu0 %v761
        %932 = vmatprep.subr.mxu0 0.0
        %933 = vmatpush1.msra.mxu0 %v816
        %934 = vmatprep.subr.mxu0 0.0
        %935 = vmatpush1.msra.mxu0 %v826
        %936 = vmatprep.subr.mxu0 0.0
        %937 = vmatpush1.msra.mxu0 %v836
        %938 = vmatprep.subr.mxu0 0.0
        %939 = vmatpush1.msra.mxu0 %v846
        %940 = vmatprep.subr.mxu0 0.0
        %941 = vmatpush1.msra.mxu0 0.0
        %942 = vmatprep.subr.mxu0 0.0
        %943 = vmatpush1.msra.mxu0 0.0
        %944 = vmatprep.subr.mxu0 0.0
        %945 = vmatpush1.msra.mxu0 0.0
        %946 = vmatprep.subr.mxu0 0.0
        %947 = vmatpush1.msra.mxu0 0.0
        %948 = vmatprep.subr.mxu0 0.0
        %949 = vmatpush1.msra.mxu0 0.0
        %950 = vmatprep.subr.mxu0 0.0
        %951 = vmatpush1.msra.mxu0 0.0
        %952 = vmatprep.subr.mxu0 0.0
        %953 = vmatpush1.msra.mxu0 0.0
        %954 = vmatprep.subr.mxu0 0.0
        %955 = vmatpush1.msra.mxu0 0.0
        %956 = vmatprep.subr.mxu0 0.0
        %957 = vmatpush1.msra.mxu0 0.0
        %958 = vmatprep.subr.mxu0 0.0
        %959 = vmatpush1.msra.mxu0 0.0
        %960 = vmatprep.subr.mxu0 0.0
        %961 = vmatpush1.msra.mxu0 0.0
        %962 = vmatprep.subr.mxu0 0.0
        %963 = vmatpush1.msra.mxu0 0.0
        %964 = vmatprep.subr.mxu0 0.0
        %965 = vmatpush1.msra.mxu0 0.0
        %966 = vmatprep.subr.mxu0 0.0
        %967 = vmatpush1.msra.mxu0 0.0
        %968 = vmatprep.subr.mxu0 0.0
        %969 = vmatpush1.msra.mxu0 0.0
        %970 = vmatprep.subr.mxu0 0.0
        %971 = vmatpush1.msra.mxu0 0.0
        %972 = vmatprep.subr.mxu0 0.0
        %973 = vmatpush1.msra.mxu0 0.0
        %974 = vmatprep.subr.mxu0 0.0
        %975 = vmatpush1.msra.mxu0 0.0
        %976 = vmatprep.subr.mxu0 0.0
        %977 = vmatpush1.msra.mxu0 0.0
        %978 = vmatprep.subr.mxu0 0.0
        %979 = vmatpush1.msra.mxu0 0.0
        %980 = vmatprep.subr.mxu0 0.0
        %981 = vmatpush1.msra.mxu0 0.0
        %982 = vmatprep.subr.mxu0 0.0
        %983 = vmatpush1.msra.mxu0 0.0
        %984 = vmatprep.subr.mxu0 0.0
        %985 = vmatpush1.msra.mxu0 0.0
        %986 = vmatprep.mubr.f32.mxu0 0.0
        %987 = vmatmul.mubr.f32.gmra.mrb[0].mxu0 %v849
        %v988 = vpop.f32.mrb[0].mxu0
        %v989 = vadd.f32 0.0, %v988
        %v990 = vpop.f32.mrb[0].mxu0
        %991 = vdwg.mxu0
        %993 = vset.pattern.permute.xlu0 0
        %994 = vperm.xlu0 %993, %v763
        %v995 = vpop.permute.xlu0 %994
        %v997 = vmul.f32 %v918, %v995
        %v998 = vmul.f32 %v920, %v995
        %v999 = vmul.f32 %v989, %v995
        %1001 = vset.pattern.permute.xlu0 0
        %1002 = vperm.xlu0 %1001, %v764
        %v1003 = vpop.permute.xlu0 %1002
        %v1005 = vadd.f32 %v997, %v1003
        %v1006 = vadd.f32 %v998, %v1003
        %v1007 = vadd.f32 %v999, %v1003
        %v1008 = vmax.f32 %v1005, 0.0
        %v1009 = vmax.f32 %v1006, 0.0
        %v1010 = vmax.f32 %v1007, 0.0
        %v1011 = vld [vmem:[%s12] sm:$0x7]
        %v1013 = vlaneseq
        %v1014 = vshrl.u32 %v1013, 7
        %v1015 = vsub.s32 0, %v1014
        %v1016 = vrot.slane %v1011, %v1015
        %v1017 = vlaneseq
        %v1018 = vshrl.u32 %v1017, 7
        %v1019 = vsub.s32 1, %v1018
        %v1020 = vrot.slane %v1011, %v1019
        %v1021 = vlaneseq
        %v1022 = vshrl.u32 %v1021, 7
        %v1023 = vsub.s32 2, %v1022
        %v1024 = vrot.slane %v1011, %v1023
        %v1028 = vmul.f32 %v1008, %v1016
        %v1029 = vmul.f32 %v1009, %v1020
        %v1030 = vmul.f32 %v1010, %v1024
        %v1031 = vld [vmem:[%s9] sm:$0xff]
        %v1032 = vld [vmem:[%s10] sm:$0xff]
        %v1033 = vld [vmem:[%s11] sm:$0xff]
        %1034 = vrot.lane.b32.xlu0 %v1028, 19
        %v1035 = vpop.permute.xlu0 %1034
        %1036 = vrot.lane.b32.xlu0 %v1029, 19
        %v1037 = vpop.permute.xlu0 %1036
        %1038 = vrot.lane.b32.xlu0 %v1030, 19
        %v1039 = vpop.permute.xlu0 %1038
        %v1040 = vsel %vm773, %v1037, %v1039
        %v1041 = vsel %vm773, %v1035, %v1037
        %v1042 = vsel %vm773, %v1039, %v1035
        %1043 = vrot.lane.b32.xlu0 %v1028, 18
        %v1044 = vpop.permute.xlu0 %1043
        %1045 = vrot.lane.b32.xlu0 %v1029, 18
        %v1046 = vpop.permute.xlu0 %1045
        %1047 = vrot.lane.b32.xlu0 %v1030, 18
        %v1048 = vpop.permute.xlu0 %1047
        %v1049 = vsel %vm783, %v1046, %v1048
        %v1050 = vsel %vm783, %v1044, %v1046
        %v1051 = vsel %vm783, %v1048, %v1044
        %1052 = vrot.lane.b32.xlu0 %v1028, 17
        %v1053 = vpop.permute.xlu0 %1052
        %1054 = vrot.lane.b32.xlu0 %v1029, 17
        %v1055 = vpop.permute.xlu0 %1054
        %1056 = vrot.lane.b32.xlu0 %v1030, 17
        %v1057 = vpop.permute.xlu0 %1056
        %v1058 = vsel %vm793, %v1055, %v1057
        %v1059 = vsel %vm793, %v1053, %v1055
        %v1060 = vsel %vm793, %v1057, %v1053
        %1061 = vrot.lane.b32.xlu0 %v1028, 1
        %v1062 = vpop.permute.xlu0 %1061
        %1063 = vrot.lane.b32.xlu0 %v1029, 1
        %v1064 = vpop.permute.xlu0 %1063
        %1065 = vrot.lane.b32.xlu0 %v1030, 1
        %v1066 = vpop.permute.xlu0 %1065
        %v1067 = vsel %vm803, %v1064, %v1066
        %v1068 = vsel %vm803, %v1062, %v1064
        %v1069 = vsel %vm803, %v1066, %v1062
        %1070 = vrot.lane.b32.xlu0 %v1028, 127
        %v1071 = vpop.permute.xlu0 %1070
        %1072 = vrot.lane.b32.xlu0 %v1029, 127
        %v1073 = vpop.permute.xlu0 %1072
        %1074 = vrot.lane.b32.xlu0 %v1030, 127
        %v1075 = vpop.permute.xlu0 %1074
        %v1076 = vsel %vm813, %v1073, %v1075
        %v1077 = vsel %vm813, %v1071, %v1073
        %v1078 = vsel %vm813, %v1075, %v1071
        %1079 = vrot.lane.b32.xlu0 %v1028, 111
        %v1080 = vpop.permute.xlu0 %1079
        %1081 = vrot.lane.b32.xlu0 %v1029, 111
        %v1082 = vpop.permute.xlu0 %1081
        %1083 = vrot.lane.b32.xlu0 %v1030, 111
        %v1084 = vpop.permute.xlu0 %1083
        %v1085 = vsel %vm823, %v1082, %v1084
        %v1086 = vsel %vm823, %v1080, %v1082
        %v1087 = vsel %vm823, %v1084, %v1080
        %1088 = vrot.lane.b32.xlu0 %v1028, 110
        %v1089 = vpop.permute.xlu0 %1088
        %1090 = vrot.lane.b32.xlu0 %v1029, 110
        %v1091 = vpop.permute.xlu0 %1090
        %1092 = vrot.lane.b32.xlu0 %v1030, 110
        %v1093 = vpop.permute.xlu0 %1092
        %v1094 = vsel %vm833, %v1091, %v1093
        %v1095 = vsel %vm833, %v1089, %v1091
        %v1096 = vsel %vm833, %v1093, %v1089
        %1097 = vrot.lane.b32.xlu0 %v1028, 109
        %v1098 = vpop.permute.xlu0 %1097
        %1099 = vrot.lane.b32.xlu0 %v1029, 109
        %v1100 = vpop.permute.xlu0 %1099
        %1101 = vrot.lane.b32.xlu0 %v1030, 109
        %v1102 = vpop.permute.xlu0 %1101
        %v1103 = vsel %vm843, %v1100, %v1102
        %v1104 = vsel %vm843, %v1098, %v1100
        %v1105 = vsel %vm843, %v1102, %v1098
        %v1107 = vsel %vm847, %v1031, 0
        %1109 = vmatprep.subr.mxu0 %v1041
        %1110 = vmatpush1.msra.mxu0 %v1042
        %1111 = vmatprep.subr.mxu0 %v1050
        %1112 = vmatpush1.msra.mxu0 %v1051
        %1113 = vmatprep.subr.mxu0 %v1059
        %1114 = vmatpush1.msra.mxu0 %v1060
        %1115 = vmatprep.subr.mxu0 %v1068
        %1116 = vmatpush1.msra.mxu0 %v1069
        %1117 = vmatprep.subr.mxu0 %v1029
        %1118 = vmatpush1.msra.mxu0 %v1028
        %1119 = vmatprep.subr.mxu0 %v1076
        %1120 = vmatpush1.msra.mxu0 %v1077
        %1121 = vmatprep.subr.mxu0 %v1085
        %1122 = vmatpush1.msra.mxu0 %v1086
        %1123 = vmatprep.subr.mxu0 %v1094
        %1124 = vmatpush1.msra.mxu0 %v1095
        %1125 = vmatprep.subr.mxu0 %v1103
        %1126 = vmatpush1.msra.mxu0 %v1104
        %1127 = vmatprep.subr.mxu0 0.0
        %1128 = vmatpush1.msra.mxu0 0.0
        %1129 = vmatprep.subr.mxu0 0.0
        %1130 = vmatpush1.msra.mxu0 0.0
        %1131 = vmatprep.subr.mxu0 0.0
        %1132 = vmatpush1.msra.mxu0 0.0
        %1133 = vmatprep.subr.mxu0 0.0
        %1134 = vmatpush1.msra.mxu0 0.0
        %1135 = vmatprep.subr.mxu0 0.0
        %1136 = vmatpush1.msra.mxu0 0.0
        %1137 = vmatprep.subr.mxu0 0.0
        %1138 = vmatpush1.msra.mxu0 0.0
        %1139 = vmatprep.subr.mxu0 0.0
        %1140 = vmatpush1.msra.mxu0 0.0
        %1141 = vmatprep.subr.mxu0 0.0
        %1142 = vmatpush1.msra.mxu0 0.0
        %1143 = vmatprep.subr.mxu0 0.0
        %1144 = vmatpush1.msra.mxu0 0.0
        %1145 = vmatprep.subr.mxu0 0.0
        %1146 = vmatpush1.msra.mxu0 0.0
        %1147 = vmatprep.subr.mxu0 0.0
        %1148 = vmatpush1.msra.mxu0 0.0
        %1149 = vmatprep.subr.mxu0 0.0
        %1150 = vmatpush1.msra.mxu0 0.0
        %1151 = vmatprep.subr.mxu0 0.0
        %1152 = vmatpush1.msra.mxu0 0.0
        %1153 = vmatprep.subr.mxu0 0.0
        %1154 = vmatpush1.msra.mxu0 0.0
        %1155 = vmatprep.subr.mxu0 0.0
        %1156 = vmatpush1.msra.mxu0 0.0
        %1157 = vmatprep.subr.mxu0 0.0
        %1158 = vmatpush1.msra.mxu0 0.0
        %1159 = vmatprep.subr.mxu0 0.0
        %1160 = vmatpush1.msra.mxu0 0.0
        %1161 = vmatprep.subr.mxu0 0.0
        %1162 = vmatpush1.msra.mxu0 0.0
        %1163 = vmatprep.subr.mxu0 0.0
        %1164 = vmatpush1.msra.mxu0 0.0
        %1165 = vmatprep.subr.mxu0 0.0
        %1166 = vmatpush1.msra.mxu0 0.0
        %1167 = vmatprep.subr.mxu0 0.0
        %1168 = vmatpush1.msra.mxu0 0.0
        %1169 = vmatprep.subr.mxu0 0.0
        %1170 = vmatpush1.msra.mxu0 0.0
        %1171 = vmatprep.subr.mxu0 0.0
        %1172 = vmatpush1.msra.mxu0 0.0
        %1173 = vmatprep.mubr.f32.mxu0 0.0
        %1174 = vmatmul.mubr.f32.gmra.mrb[0].mxu0 %v1107
        %v1175 = vpop.f32.mrb[0].mxu0
        %v1176 = vadd.f32 0.0, %v1175
        %v1177 = vpop.f32.mrb[0].mxu0
        %v1178 = vadd.f32 0.0, %v1177
        %1179 = vdwg.mxu0
        %1180 = vmatprep.subr.mxu0 0.0
        %1181 = vmatpush1.msra.mxu0 %v1040
        %1182 = vmatprep.subr.mxu0 0.0
        %1183 = vmatpush1.msra.mxu0 %v1049
        %1184 = vmatprep.subr.mxu0 0.0
        %1185 = vmatpush1.msra.mxu0 %v1058
        %1186 = vmatprep.subr.mxu0 0.0
        %1187 = vmatpush1.msra.mxu0 %v1067
        %1188 = vmatprep.subr.mxu0 0.0
        %1189 = vmatpush1.msra.mxu0 %v1030
        %1190 = vmatprep.subr.mxu0 0.0
        %1191 = vmatpush1.msra.mxu0 %v1078
        %1192 = vmatprep.subr.mxu0 0.0
        %1193 = vmatpush1.msra.mxu0 %v1087
        %1194 = vmatprep.subr.mxu0 0.0
        %1195 = vmatpush1.msra.mxu0 %v1096
        %1196 = vmatprep.subr.mxu0 0.0
        %1197 = vmatpush1.msra.mxu0 %v1105
        %1198 = vmatprep.subr.mxu0 0.0
        %1199 = vmatpush1.msra.mxu0 0.0
        %1200 = vmatprep.subr.mxu0 0.0
        %1201 = vmatpush1.msra.mxu0 0.0
        %1202 = vmatprep.subr.mxu0 0.0
        %1203 = vmatpush1.msra.mxu0 0.0
        %1204 = vmatprep.subr.mxu0 0.0
        %1205 = vmatpush1.msra.mxu0 0.0
        %1206 = vmatprep.subr.mxu0 0.0
        %1207 = vmatpush1.msra.mxu0 0.0
        %1208 = vmatprep.subr.mxu0 0.0
        %1209 = vmatpush1.msra.mxu0 0.0
        %1210 = vmatprep.subr.mxu0 0.0
        %1211 = vmatpush1.msra.mxu0 0.0
        %1212 = vmatprep.subr.mxu0 0.0
        %1213 = vmatpush1.msra.mxu0 0.0
        %1214 = vmatprep.subr.mxu0 0.0
        %1215 = vmatpush1.msra.mxu0 0.0
        %1216 = vmatprep.subr.mxu0 0.0
        %1217 = vmatpush1.msra.mxu0 0.0
        %1218 = vmatprep.subr.mxu0 0.0
        %1219 = vmatpush1.msra.mxu0 0.0
        %1220 = vmatprep.subr.mxu0 0.0
        %1221 = vmatpush1.msra.mxu0 0.0
        %1222 = vmatprep.subr.mxu0 0.0
        %1223 = vmatpush1.msra.mxu0 0.0
        %1224 = vmatprep.subr.mxu0 0.0
        %1225 = vmatpush1.msra.mxu0 0.0
        %1226 = vmatprep.subr.mxu0 0.0
        %1227 = vmatpush1.msra.mxu0 0.0
        %1228 = vmatprep.subr.mxu0 0.0
        %1229 = vmatpush1.msra.mxu0 0.0
        %1230 = vmatprep.subr.mxu0 0.0
        %1231 = vmatpush1.msra.mxu0 0.0
        %1232 = vmatprep.subr.mxu0 0.0
        %1233 = vmatpush1.msra.mxu0 0.0
        %1234 = vmatprep.subr.mxu0 0.0
        %1235 = vmatpush1.msra.mxu0 0.0
        %1236 = vmatprep.subr.mxu0 0.0
        %1237 = vmatpush1.msra.mxu0 0.0
        %1238 = vmatprep.subr.mxu0 0.0
        %1239 = vmatpush1.msra.mxu0 0.0
        %1240 = vmatprep.subr.mxu0 0.0
        %1241 = vmatpush1.msra.mxu0 0.0
        %1242 = vmatprep.subr.mxu0 0.0
        %1243 = vmatpush1.msra.mxu0 0.0
        %1244 = vmatprep.mubr.f32.mxu0 0.0
        %1245 = vmatmul.mubr.f32.gmra.mrb[0].mxu0 %v1107
        %v1246 = vpop.f32.mrb[0].mxu0
        %v1247 = vadd.f32 0.0, %v1246
        %v1248 = vpop.f32.mrb[0].mxu0
        %1249 = vdwg.mxu0
        %1251 = vset.pattern.permute.xlu0 0
        %1252 = vperm.xlu0 %1251, %v1032
        %v1253 = vpop.permute.xlu0 %1252
        %v1255 = vmul.f32 %v1176, %v1253
        %v1256 = vmul.f32 %v1178, %v1253
        %v1257 = vmul.f32 %v1247, %v1253
        %1259 = vset.pattern.permute.xlu0 0
        %1260 = vperm.xlu0 %1259, %v1033
        %v1261 = vpop.permute.xlu0 %1260
        %v1263 = vadd.f32 %v1255, %v1261
        %v1264 = vadd.f32 %v1256, %v1261
        %v1265 = vadd.f32 %v1257, %v1261
        %v1266 = vmax.f32 %v1263, 0.0
        %v1267 = vmax.f32 %v1264, 0.0
        %v1268 = vmax.f32 %v1265, 0.0
        %v1269 = vadd.f32 %v1266, %v759
        %v1270 = vadd.f32 %v1267, %v760
        %v1271 = vadd.f32 %v1268, %v761
        %v1272 = vmax.f32 %v1269, 0.0
        %v1273 = vmax.f32 %v1270, 0.0
        %v1274 = vmax.f32 %v1271, 0.0
        %1275 = vst [vmem:[%s474] sm:$0xff] %v1272
        %1276 = vst [vmem:[%s474 + $0x8] sm:$0xff] %v1273
        %1277 = vst [vmem:[%s474 + $0x10] sm:$0xff] %v1274
        %s1278 = sand.u32 %s320, 1
        %s1279 = scalar_lea.sflag [#allocation4], %s1278
        %s1280 = sand.u32 %s320, 1
        %s1281 = smul.addr %s1280, 24
        %s1282 = scalar_lea.vmem [#allocation7], %s1281
        // Predicated region
        $region81: #{tpu_custom_call.1} parent=71 // pred_check
          %p1283 = pneg %p330
        $region82: #{tpu_custom_call.1} parent=71 // pred_check_branch
          %1285 = sbr.rel (%p1283) target = $region84
        $region83: #{tpu_custom_call.1} parent=71 // pred_region
          %s1287 = ssub.s32 384, 384
          %1288 = vsyncadd %s1279, %s1287
          %s1289 = smul.addr %s29, 3
          %s1290 = smul.addr %s1289, 128
          %s1291 = scalar_lea.hbm %s13, %s1290
          %s1293 = sshll.u32 %s1282, 4
          %s1294 = int_to_ptr.vmem [resolvable:$true] %s1293
          %1296 = dma.vmem_to_hbm [thread:$0]  %s1294, 384, %s1291, %s1279
        $region84: #{tpu_custom_call.1} parent=71 // pred_fallthru
          _
      $region72: #{tpu_custom_call.1} parent=5 // pred_fallthru
        _
      %p1297 = scmp.le.s32.totalorder 2, %s24
      // Predicated region
      $region85: #{tpu_custom_call.1} parent=5 // pred_check
        %p1298 = pneg %p1297
      $region86: #{tpu_custom_call.1} parent=5 // pred_check_branch
        %1300 = sbr.rel (%p1298) target = $region88
      $region87: #{tpu_custom_call.1} parent=5 // pred_region
        %s1301 = ssub.s32 %s24, 2
        // Predicated region
        $region89: #{tpu_custom_call.1} parent=87 // pred_check
          %p1302 = pneg %p336
        $region90: #{tpu_custom_call.1} parent=87 // pred_check_branch
          %1304 = sbr.rel (%p1302) target = $region92
        $region91: #{tpu_custom_call.1} parent=87 // pred_region
          %s1305 = sand.u32 %s321, 1
          %s1306 = scalar_lea.sflag [#allocation4], %s1305
          %s1307 = sand.u32 %s321, 1
          %s1308 = smul.addr %s1307, 24
          %s1309 = scalar_lea.vmem [#allocation7], %s1308
          %1310 = dma.done %s1306, 384
        $region92: #{tpu_custom_call.1} parent=87 // pred_fallthru
          _
      $region88: #{tpu_custom_call.1} parent=5 // pred_fallthru
        _
    $region6: #{tpu_custom_call.1} parent=1 // loop_footer
      %s28 = sadd.s32 1, %s24
    $region7: #{tpu_custom_call.1} parent=1 // loop_footer_branch
      %23 = sbr.rel target = $region3
    $region8: #{tpu_custom_call.1} parent=1 // loop_exit
      _
    %1311 = vsyncpa [#allocation3], 1
    %s1312 = scalar_lea.sflag [#allocation3], 1
    %1313 = vsyncpa %s1312, 1
    %1314 = vsyncpa [#allocation6], 1
    %1315 = vsyncpa [#allocation4], 1
    %s1316 = scalar_lea.sflag [#allocation4], 1
    %1317 = vsyncpa %s1316, 1

</llo_original>
